<compile_context>
chip_gen: v6e
topology: v6e:2x2x1
jax: 0.10.0
libtpu: 0.0.40
codegen_flags: <defaults>
</compile_context>

<pallas_src>
import jax
import jax.numpy as jnp
from jax.experimental import pallas as pl
from jax.experimental.pallas import tpu as pltpu


def _round_up(v, m):
    return ((v + m - 1) // m) * m


# ----------------------------------------------------------------------------
# Single fused kernel
# ----------------------------------------------------------------------------
def graph_encoder_kernel(x_ref, a_ref, pcnt_ref, invc_ref, ohs_ref,
                         wi_ref, bi_ref, ws_ref, wn_ref, bs_ref,
                         ceo1_ref, ceo2_ref, beo_ref,
                         w1_ref, b1_ref, w2r_ref, b2_ref,
                         pooled_ref, score_ref):
    f32, bf16 = jnp.float32, jnp.bfloat16

    # init_transform: Linear(in_dim -> hidden)   (K zero-padded to 128 lanes)
    h = jnp.dot(x_ref[...], wi_ref[...], preferred_element_type=f32) + bi_ref[...]
    h_bf = h.astype(bf16)

    # SAGEConv(sum): neighbor sum as dense adjacency matmul, then two
    # accumulating dots (no (N, 2*Hp) concat; friendlier to v5e's 128-deep MXU).
    agg = jnp.dot(a_ref[...], h_bf, preferred_element_type=f32)
    h2 = (jnp.dot(h_bf, ws_ref[...], preferred_element_type=f32)
          + jnp.dot(agg.astype(bf16), wn_ref[...], preferred_element_type=f32)
          + bs_ref[...])

    # global_mean_pool: exact 0/1 membership counts on the MXU (bf16-exact),
    # f32 reciprocal scaling on the VPU (free under MXU slack).
    pooled = (jnp.dot(pcnt_ref[...], h2.astype(bf16), preferred_element_type=f32)
              * invc_ref[...])
    pooled_ref[...] = pooled                                          # (Gp, Hp)

    # ---- graph_pre_decoder -------------------------------------------------
    # Conv1d(1->4,k=3,p=1) + MaxPool1d(2,2) + channel-major flatten folded into
    # per-GRAPH tap matmuls; the per-pair result is rebuilt with one stacked
    # one-hot gather, so nothing Ep-sized ever touches the conv weights.
    pooled_bf = pooled.astype(bf16)
    pc1 = jnp.dot(pooled_bf, ceo1_ref[...], preferred_element_type=f32)  # (Gp, 8*Lh)
    pc2 = jnp.dot(pooled_bf, ceo2_ref[...], preferred_element_type=f32)
    pc = jnp.concatenate([pc1, pc2], axis=0).astype(bf16)                # (2*Gp, 8*Lh)
    y = jnp.dot(ohs_ref[...], pc, preferred_element_type=f32) + beo_ref[...]
    half = y.shape[-1] // 2
    m = jnp.maximum(y[:, :half], y[:, half:])                            # MaxPool(2,2)

    # TODO(synk): F.dropout(x, 0.1) (training-mode stochastic) applied as identity.
    hl = jnp.dot(m.astype(bf16), w1_ref[...], preferred_element_type=f32) + b1_ref[...]
    hl = jnp.maximum(hl, 0.0)                                             # ReLU

    # Final Linear(64 -> 1): VPU multiply + lane reduce (XLU) + single sigmoid
    # column instead of a 128x zero-padded MXU matmul + 128x dead sigmoids.
    o = jnp.sum(hl * w2r_ref[...], axis=-1, keepdims=True) + b2_ref[...]
    score_ref[...] = jax.nn.sigmoid(o)                                    # (Epp, 1)


# ----------------------------------------------------------------------------
# Host/XLA-side parameter folding (done ONCE, outside the per-call jit)
# ----------------------------------------------------------------------------
def _fold_conv_pool(conv_w, conv_b, H, Hp):
    """Fold Conv1d(1->4,k=3,pad=1) + MaxPool1d(2,2) + channel-major flatten into
    two (Hp, 8*Lh) bf16 tap matrices (one for each half of the pair concat) and
    a (1, 8*Lh) f32 bias row.  Columns 0:4*Lh are the even pool taps, 4*Lh:8*Lh
    the odd taps; MaxPool is the elementwise max of the two halves."""
    L, Lh = 2 * H, H
    k = jnp.arange(L)[:, None]                           # signal-row index

    def taps(centers):
        t = centers[None, :]
        return [(k == (t + off)).astype(jnp.float32) for off in (-1, 0, 1)]

    Se = taps(2 * jnp.arange(Lh))                        # conv centers at even t
    So = taps(2 * jnp.arange(Lh) + 1)                    # conv centers at odd t

    def fold(S):
        blocks = [conv_w[c, 0] * S[0] + conv_w[c, 1] * S[1] + conv_w[c, 2] * S[2]
                  for c in range(4)]
        return jnp.concatenate(blocks, axis=1)           # (L, 4*Lh) channel-major

    Ae, Ao = fold(Se), fold(So)

    def pad_rows(M):                                     # (H, .) -> (Hp, .)
        return jnp.pad(M, ((0, Hp - H), (0, 0)))

    ceo1 = jnp.concatenate([pad_rows(Ae[:H]), pad_rows(Ao[:H])], 1).astype(jnp.bfloat16)
    ceo2 = jnp.concatenate([pad_rows(Ae[H:]), pad_rows(Ao[H:])], 1).astype(jnp.bfloat16)
    bias = jnp.repeat(conv_b, Lh)[None, :]               # (1, 4*Lh)
    beo = jnp.concatenate([bias, bias], axis=1).astype(jnp.float32)  # (1, 8*Lh)
    return ceo1, ceo2, beo


def prepare_kernel_constants(params, target_ddi_index, in_dim, H, G):
    """Pad/fold the parameters and build the stacked DDI one-hot gather.
    Depends only on params + the DDI index -> call once, reuse every forward."""
    f32, bf16 = jnp.float32, jnp.bfloat16
    Kp = _round_up(in_dim, 128)
    Hp = _round_up(H, 128)
    Gp = _round_up(G, 8)
    Op = 128
    Ep = target_ddi_index.shape[1]
    Epp = _round_up(Ep, 8)

    def pad2(a, r, c):
        return jnp.pad(a, ((0, r - a.shape[0]), (0, c - a.shape[1])))

    ceo1, ceo2, beo = _fold_conv_pool(params['conv_w'], params['conv_b'], H, Hp)

    gids = jnp.arange(Gp, dtype=target_ddi_index.dtype)[None, :]

    def onehot(idx):                                      # (Ep,) -> (Epp, Gp) bf16
        oh = (idx[:, None] == gids).astype(bf16)
        return jnp.pad(oh, ((0, Epp - Ep), (0, 0)))

    ohs = jnp.concatenate([onehot(target_ddi_index[0]),
                           onehot(target_ddi_index[1])], axis=1)  # (Epp, 2*Gp)

    return {
        # Drug_graph
        'wi': pad2(params['wi'], Kp, Hp).astype(bf16),
        'bi': pad2(params['bi'], 1, Hp).astype(f32),
        'ws': pad2(params['ws'], Hp, Hp).astype(bf16),
        'wn': pad2(params['wn'], Hp, Hp).astype(bf16),
        'bs': pad2(params['bs'], 1, Hp).astype(f32),
        # graph_pre_decoder
        'ceo1': ceo1, 'ceo2': ceo2, 'beo': beo,
        'ohs': ohs,
        'w1': pad2(params['w1'], 4 * H, Op).astype(bf16),
        'b1': pad2(params['b1'], 1, Op).astype(f32),
        'w2r': pad2(params['w2'].T, 1, Op).astype(f32),   # (1, Op) f32 row
        'b2': params['b2'].astype(f32),                   # (1, 1)
    }


# ----------------------------------------------------------------------------
# Per-call forward (jitted): only per-batch padding + the single pallas_call
# ----------------------------------------------------------------------------
@jax.jit
def graph_encoder_forward(drug_x, A, batch, consts):
    f32, bf16 = jnp.float32, jnp.bfloat16
    N, in_dim = drug_x.shape
    Kp, Hp = consts['wi'].shape
    Epp, twoGp = consts['ohs'].shape
    Gp = twoGp // 2
    Np = _round_up(N, 8)

    x_p = jnp.pad(drug_x, ((0, Np - N), (0, Kp - in_dim))).astype(bf16)
    a_p = jnp.pad(A, ((0, Np - N), (0, Np - N))).astype(bf16)

    # exact 0/1 per-graph membership (bf16-exact) + f32 mean reciprocal
    members = batch[None, :] == jnp.arange(Gp, dtype=batch.dtype)[:, None]
    pcnt = jnp.pad(members, ((0, 0), (0, Np - N))).astype(bf16)       # (Gp, Np)
    cnt = members.sum(axis=1, keepdims=True).astype(f32)              # (Gp, 1)
    invc = jnp.where(cnt > 0, 1.0 / jnp.maximum(cnt, 1.0), 0.0)

    vmem = pl.BlockSpec(memory_space=pltpu.MemorySpace.VMEM)
    pooled_p, score_p = pl.pallas_call(
        graph_encoder_kernel,
        out_shape=(jax.ShapeDtypeStruct((Gp, Hp), f32),
                   jax.ShapeDtypeStruct((Epp, 1), f32)),
        in_specs=[vmem] * 17,
        out_specs=(vmem, vmem),
    )(x_p, a_p, pcnt, invc, consts['ohs'],
      consts['wi'], consts['bi'], consts['ws'], consts['wn'], consts['bs'],
      consts['ceo1'], consts['ceo2'], consts['beo'],
      consts['w1'], consts['b1'], consts['w2r'], consts['b2'])
    return pooled_p, score_p


def run_graph_encoder(drug_x, A, batch, consts, G, H, Ep):
    pooled_p, score_p = graph_encoder_forward(drug_x, A, batch, consts)
    return pooled_p[:G, :H], score_p[:Ep, 0]


# ----------------------------------------------------------------------------
# Pure-JAX f32 reference (faithful to the PyTorch module) for validation
# ----------------------------------------------------------------------------
def reference_forward(drug_x, A, P, index, params):
    h = drug_x @ params['wi'] + params['bi']
    agg = A @ h
    h2 = h @ params['ws'] + agg @ params['wn'] + params['bs']
    pooled = P @ h2
    z = jnp.concatenate([pooled[index[0]], pooled[index[1]]], axis=-1)
    Ep, L = z.shape
    zp = jnp.pad(z, ((0, 0), (1, 1)))
    cw, cb = params['conv_w'], params['conv_b']
    y = jnp.stack([cb[c] + cw[c, 0] * zp[:, :-2] + cw[c, 1] * zp[:, 1:-1]
                   + cw[c, 2] * zp[:, 2:] for c in range(4)], axis=1)  # (Ep,4,L)
    m = y.reshape(Ep, 4, L // 2, 2).max(-1)                            # (Ep,4,L/2)
    flat = m.reshape(Ep, 4 * (L // 2))
    o = jax.nn.relu(flat @ params['w1'] + params['b1'])
    o = (o @ params['w2'] + params['b2']).reshape(-1)
    return pooled, jax.nn.sigmoid(o)


if __name__ == "__main__":
    key = jax.random.PRNGKey(0)
    ks = jax.random.split(key, 16)

    # small shapes: 24 atoms in 6 drug graphs, 48 edges, 8 DDI pairs
    N, G, E, Ep = 24, 6, 48, 8
    IN_DIM, H = 75, 64                   # Drug_graph defaults (hidden_dim=64)

    drug_x = jax.random.normal(ks[0], (N, IN_DIM), jnp.float32)
    src = jax.random.randint(ks[1], (E,), 0, N)
    dst = jax.random.randint(ks[2], (E,), 0, N)
    batch = jnp.repeat(jnp.arange(G, dtype=jnp.int32), N // G)
    target_ddi_index = jax.random.randint(ks[3], (2, Ep), 0, G).astype(jnp.int32)

    # dense adjacency for sum aggregation: A[i, j] = #edges j -> i
    A = jnp.zeros((N, N), jnp.float32).at[dst, src].add(1.0)
    # f32 mean-pooling matrix (reference only; kernel uses counts + reciprocal)
    onehot = (batch[None, :] == jnp.arange(G)[:, None]).astype(jnp.float32)
    P = onehot / jnp.maximum(onehot.sum(axis=1, keepdims=True), 1.0)

    def init(k, shape, scale=0.05):
        return scale * jax.random.normal(k, shape, jnp.float32)

    params = {
        # Drug_graph
        'wi': init(ks[4], (IN_DIM, H)), 'bi': init(ks[5], (1, H)),
        'ws': init(ks[6], (H, H)), 'wn': init(ks[7], (H, H)),
        'bs': init(ks[8], (1, H)),
        # graph_pre_decoder
        'conv_w': init(ks[9], (4, 3), 0.3),     # Conv1d weight (4,1,3) squeezed
        'conv_b': init(ks[10], (4,), 0.3),
        'w1': init(ks[11], (4 * H, 64)),        # Linear(input_dim*4, 64), (in,out)
        'b1': init(ks[12], (1, 64)),
        'w2': init(ks[13], (64, 1)),            # Linear(64, 1), (in,out)
        'b2': init(ks[14], (1, 1)),
    }

    # one-time param folding / DDI one-hot construction (hoisted out of the jit)
    consts = prepare_kernel_constants(params, target_ddi_index, IN_DIM, H, G)

    embs, pre_score = run_graph_encoder(drug_x, A, batch, consts, G, H, Ep)
    jax.block_until_ready((embs, pre_score))

    ref_embs, ref_score = reference_forward(drug_x, A, P, target_ddi_index,
                                            params)
    assert embs.shape == (G, H) and pre_score.shape == (Ep,)
    err_e = float(jnp.max(jnp.abs(embs - ref_embs)))
    err_s = float(jnp.max(jnp.abs(pre_score - ref_score)))
    # tolerances account for bf16 MXU operands (f32 accumulation)
    assert jnp.allclose(embs, ref_embs, rtol=2e-2, atol=1e-2), err_e
    assert jnp.allclose(pre_score, ref_score, rtol=2e-2, atol=5e-3), err_s
    print("KERNEL_OK")
</pallas_src>

<mosaic_0001>
module attributes {stable_mosaic.version = 11 : i64} {
  func.func @graph_encoder_kernel(%arg0: memref<24x128xbf16, #tpu.memory_space<vmem>>, %arg1: memref<24x24xbf16, #tpu.memory_space<vmem>>, %arg2: memref<8x24xbf16, #tpu.memory_space<vmem>>, %arg3: memref<8x1xf32, #tpu.memory_space<vmem>>, %arg4: memref<8x16xbf16, #tpu.memory_space<vmem>>, %arg5: memref<128x128xbf16, #tpu.memory_space<vmem>>, %arg6: memref<1x128xf32, #tpu.memory_space<vmem>>, %arg7: memref<128x128xbf16, #tpu.memory_space<vmem>>, %arg8: memref<128x128xbf16, #tpu.memory_space<vmem>>, %arg9: memref<1x128xf32, #tpu.memory_space<vmem>>, %arg10: memref<128x512xbf16, #tpu.memory_space<vmem>>, %arg11: memref<128x512xbf16, #tpu.memory_space<vmem>>, %arg12: memref<1x512xf32, #tpu.memory_space<vmem>>, %arg13: memref<256x128xbf16, #tpu.memory_space<vmem>>, %arg14: memref<1x128xf32, #tpu.memory_space<vmem>>, %arg15: memref<1x128xf32, #tpu.memory_space<vmem>>, %arg16: memref<1x1xf32, #tpu.memory_space<vmem>>, %arg17: memref<8x128xf32, #tpu.memory_space<vmem>>, %arg18: memref<8x1xf32, #tpu.memory_space<vmem>>) attributes {dimension_semantics = [], scalar_prefetch = 0 : i64, scratch_operands = 0 : i64, tpu.core_type = #tpu.core_type<tc>} {
    %c0 = arith.constant 0 : index
    %c0_0 = arith.constant 0 : index
    %0 = vector.load %arg0[%c0, %c0_0] : memref<24x128xbf16, #tpu.memory_space<vmem>>, vector<24x128xbf16>
    %c0_1 = arith.constant 0 : index
    %c0_2 = arith.constant 0 : index
    %1 = vector.load %arg5[%c0_1, %c0_2] : memref<128x128xbf16, #tpu.memory_space<vmem>>, vector<128x128xbf16>
    %cst = arith.constant dense<0.000000e+00> : vector<24x128xf32>
    %2 = tpu.matmul %0, %1, %cst {dimension_numbers = #tpu.dot_dimension_numbers<[1], [0], [0], [1], [0, 0, 1, 1], [], []>} : vector<24x128xbf16>, vector<128x128xbf16>, vector<24x128xf32> -> vector<24x128xf32>
    %c0_3 = arith.constant 0 : index
    %c0_4 = arith.constant 0 : index
    %3 = vector.load %arg6[%c0_3, %c0_4] : memref<1x128xf32, #tpu.memory_space<vmem>>, vector<1x128xf32>
    %4 = vector.broadcast %3 : vector<1x128xf32> to vector<24x128xf32>
    %5 = arith.addf %2, %4 : vector<24x128xf32>
    %6 = arith.truncf %5 : vector<24x128xf32> to vector<24x128xbf16>
    %c0_5 = arith.constant 0 : index
    %c0_6 = arith.constant 0 : index
    %7 = vector.load %arg1[%c0_5, %c0_6] : memref<24x24xbf16, #tpu.memory_space<vmem>>, vector<24x24xbf16>
    %cst_7 = arith.constant dense<0.000000e+00> : vector<24x128xf32>
    %8 = tpu.matmul %7, %6, %cst_7 {dimension_numbers = #tpu.dot_dimension_numbers<[1], [0], [0], [1], [0, 0, 1, 1], [], []>} : vector<24x24xbf16>, vector<24x128xbf16>, vector<24x128xf32> -> vector<24x128xf32>
    %c0_8 = arith.constant 0 : index
    %c0_9 = arith.constant 0 : index
    %9 = vector.load %arg7[%c0_8, %c0_9] : memref<128x128xbf16, #tpu.memory_space<vmem>>, vector<128x128xbf16>
    %cst_10 = arith.constant dense<0.000000e+00> : vector<24x128xf32>
    %10 = tpu.matmul %6, %9, %cst_10 {dimension_numbers = #tpu.dot_dimension_numbers<[1], [0], [0], [1], [0, 0, 1, 1], [], []>} : vector<24x128xbf16>, vector<128x128xbf16>, vector<24x128xf32> -> vector<24x128xf32>
    %11 = arith.truncf %8 : vector<24x128xf32> to vector<24x128xbf16>
    %c0_11 = arith.constant 0 : index
    %c0_12 = arith.constant 0 : index
    %12 = vector.load %arg8[%c0_11, %c0_12] : memref<128x128xbf16, #tpu.memory_space<vmem>>, vector<128x128xbf16>
    %cst_13 = arith.constant dense<0.000000e+00> : vector<24x128xf32>
    %13 = tpu.matmul %11, %12, %cst_13 {dimension_numbers = #tpu.dot_dimension_numbers<[1], [0], [0], [1], [0, 0, 1, 1], [], []>} : vector<24x128xbf16>, vector<128x128xbf16>, vector<24x128xf32> -> vector<24x128xf32>
    %14 = arith.addf %10, %13 : vector<24x128xf32>
    %c0_14 = arith.constant 0 : index
    %c0_15 = arith.constant 0 : index
    %15 = vector.load %arg9[%c0_14, %c0_15] : memref<1x128xf32, #tpu.memory_space<vmem>>, vector<1x128xf32>
    %16 = vector.broadcast %15 : vector<1x128xf32> to vector<24x128xf32>
    %17 = arith.addf %14, %16 : vector<24x128xf32>
    %c0_16 = arith.constant 0 : index
    %c0_17 = arith.constant 0 : index
    %18 = vector.load %arg2[%c0_16, %c0_17] : memref<8x24xbf16, #tpu.memory_space<vmem>>, vector<8x24xbf16>
    %19 = arith.truncf %17 : vector<24x128xf32> to vector<24x128xbf16>
    %cst_18 = arith.constant dense<0.000000e+00> : vector<8x128xf32>
    %20 = tpu.matmul %18, %19, %cst_18 {dimension_numbers = #tpu.dot_dimension_numbers<[1], [0], [0], [1], [0, 0, 1, 1], [], []>} : vector<8x24xbf16>, vector<24x128xbf16>, vector<8x128xf32> -> vector<8x128xf32>
    %c0_19 = arith.constant 0 : index
    %c0_20 = arith.constant 0 : index
    %21 = vector.load %arg3[%c0_19, %c0_20] : memref<8x1xf32, #tpu.memory_space<vmem>>, vector<8x1xf32>
    %22 = vector.broadcast %21 : vector<8x1xf32> to vector<8x128xf32>
    %23 = arith.mulf %20, %22 : vector<8x128xf32>
    %c0_21 = arith.constant 0 : index
    %c0_22 = arith.constant 0 : index
    %24 = vector.load %arg17[%c0_21, %c0_22] : memref<8x128xf32, #tpu.memory_space<vmem>>, vector<8x128xf32>
    tpu.vector_store %arg17[%c0_21, %c0_22], %23 {strides = array<i32>} : memref<8x128xf32, #tpu.memory_space<vmem>>, vector<8x128xf32>,
    %25 = arith.truncf %23 : vector<8x128xf32> to vector<8x128xbf16>
    %c0_23 = arith.constant 0 : index
    %c0_24 = arith.constant 0 : index
    %26 = vector.load %arg10[%c0_23, %c0_24] : memref<128x512xbf16, #tpu.memory_space<vmem>>, vector<128x512xbf16>
    %cst_25 = arith.constant dense<0.000000e+00> : vector<8x512xf32>
    %27 = tpu.matmul %25, %26, %cst_25 {dimension_numbers = #tpu.dot_dimension_numbers<[1], [0], [0], [1], [0, 0, 1, 1], [], []>} : vector<8x128xbf16>, vector<128x512xbf16>, vector<8x512xf32> -> vector<8x512xf32>
    %c0_26 = arith.constant 0 : index
    %c0_27 = arith.constant 0 : index
    %28 = vector.load %arg11[%c0_26, %c0_27] : memref<128x512xbf16, #tpu.memory_space<vmem>>, vector<128x512xbf16>
    %cst_28 = arith.constant dense<0.000000e+00> : vector<8x512xf32>
    %29 = tpu.matmul %25, %28, %cst_28 {dimension_numbers = #tpu.dot_dimension_numbers<[1], [0], [0], [1], [0, 0, 1, 1], [], []>} : vector<8x128xbf16>, vector<128x512xbf16>, vector<8x512xf32> -> vector<8x512xf32>
    %30 = tpu.concatenate %27, %29 in 0 : vector<8x512xf32>, vector<8x512xf32> -> vector<16x512xf32>
    %31 = arith.truncf %30 : vector<16x512xf32> to vector<16x512xbf16>
    %c0_29 = arith.constant 0 : index
    %c0_30 = arith.constant 0 : index
    %32 = vector.load %arg4[%c0_29, %c0_30] : memref<8x16xbf16, #tpu.memory_space<vmem>>, vector<8x16xbf16>
    %cst_31 = arith.constant dense<0.000000e+00> : vector<8x512xf32>
    %33 = tpu.matmul %32, %31, %cst_31 {dimension_numbers = #tpu.dot_dimension_numbers<[1], [0], [0], [1], [0, 0, 1, 1], [], []>} : vector<8x16xbf16>, vector<16x512xbf16>, vector<8x512xf32> -> vector<8x512xf32>
    %c0_32 = arith.constant 0 : index
    %c0_33 = arith.constant 0 : index
    %34 = vector.load %arg12[%c0_32, %c0_33] : memref<1x512xf32, #tpu.memory_space<vmem>>, vector<1x512xf32>
    %35 = vector.broadcast %34 : vector<1x512xf32> to vector<8x512xf32>
    %36 = arith.addf %33, %35 : vector<8x512xf32>
    %37 = vector.extract_strided_slice %36 {offsets = [0, 0], sizes = [8, 256], strides = [1, 1]} : vector<8x512xf32> to vector<8x256xf32>
    %38 = vector.extract_strided_slice %36 {offsets = [0, 256], sizes = [8, 256], strides = [1, 1]} : vector<8x512xf32> to vector<8x256xf32>
    %39 = arith.maximumf %37, %38 : vector<8x256xf32>
    %40 = arith.truncf %39 : vector<8x256xf32> to vector<8x256xbf16>
    %c0_34 = arith.constant 0 : index
    %c0_35 = arith.constant 0 : index
    %41 = vector.load %arg13[%c0_34, %c0_35] : memref<256x128xbf16, #tpu.memory_space<vmem>>, vector<256x128xbf16>
    %cst_36 = arith.constant dense<0.000000e+00> : vector<8x128xf32>
    %42 = tpu.matmul %40, %41, %cst_36 {dimension_numbers = #tpu.dot_dimension_numbers<[1], [0], [0], [1], [0, 0, 1, 1], [], []>} : vector<8x256xbf16>, vector<256x128xbf16>, vector<8x128xf32> -> vector<8x128xf32>
    %c0_37 = arith.constant 0 : index
    %c0_38 = arith.constant 0 : index
    %43 = vector.load %arg14[%c0_37, %c0_38] : memref<1x128xf32, #tpu.memory_space<vmem>>, vector<1x128xf32>
    %44 = vector.broadcast %43 : vector<1x128xf32> to vector<8x128xf32>
    %45 = arith.addf %42, %44 : vector<8x128xf32>
    %cst_39 = arith.constant 0.000000e+00 : f32
    %46 = vector.broadcast %cst_39 : f32 to vector<8x128xf32>
    %47 = arith.maximumf %45, %46 : vector<8x128xf32>
    %c0_40 = arith.constant 0 : index
    %c0_41 = arith.constant 0 : index
    %48 = vector.load %arg15[%c0_40, %c0_41] : memref<1x128xf32, #tpu.memory_space<vmem>>, vector<1x128xf32>
    %49 = vector.broadcast %48 : vector<1x128xf32> to vector<8x128xf32>
    %50 = arith.mulf %47, %49 : vector<8x128xf32>
    %cst_42 = arith.constant dense<0.000000e+00> : vector<8xf32>
    %51 = vector.multi_reduction <add>, %50, %cst_42 [1] : vector<8x128xf32> to vector<8xf32>
    %52 = vector.shape_cast %51 : vector<8xf32> to vector<8x1xf32>
    %c0_43 = arith.constant 0 : index
    %c0_44 = arith.constant 0 : index
    %53 = vector.load %arg16[%c0_43, %c0_44] : memref<1x1xf32, #tpu.memory_space<vmem>>, vector<1x1xf32>
    %54 = vector.broadcast %53 : vector<1x1xf32> to vector<8x1xf32>
    %55 = arith.addf %52, %54 : vector<8x1xf32>
    %56 = arith.negf %55 : vector<8x1xf32>
    %57 = math.exp %56 : vector<8x1xf32>
    %cst_45 = arith.constant 1.000000e+00 : f32
    %58 = vector.broadcast %cst_45 : f32 to vector<8x1xf32>
    %59 = arith.addf %58, %57 : vector<8x1xf32>
    %60 = arith.divf %58, %59 : vector<8x1xf32>
    %c0_46 = arith.constant 0 : index
    %c0_47 = arith.constant 0 : index
    %61 = vector.load %arg18[%c0_46, %c0_47] : memref<8x1xf32, #tpu.memory_space<vmem>>, vector<8x1xf32>
    tpu.vector_store %arg18[%c0_46, %c0_47], %60 {strides = array<i32>} : memref<8x1xf32, #tpu.memory_space<vmem>>, vector<8x1xf32>,
    return
  }
}

</mosaic_0001>

<llo_original>
// kernel: graph_encoder_forward.1
$region0: #{graph_encoder_forward.1}
  #allocation0 [shape = 'u32[]', space=smem, size = 0x4, offset = 0x4, fixed_abs, tag = 'smem constant byte address 0x4 - core index']
  #allocation1 [shape = 'u32[144,128]{1,0:T(1,128)}', space=vmem, size = 0x12000, scoped, tag = 'internal scratch']
  #allocation2 [shape = 'f32[1,1]{1,0:T(1,128)S(1)}', space=vmem, size = 0x200, scoped, tag = 'scoped memory for graph_encoder_forward.1']
  %s0 = inlined_call_operand.vmem [shape: bf16[24,128], index: 0, kind: input, shape index: {}]
  %s1 = inlined_call_operand.vmem [shape: bf16[24,24], index: 1, kind: input, shape index: {}]
  %s2 = inlined_call_operand.vmem [shape: bf16[8,24], index: 2, kind: input, shape index: {}]
  %s3 = inlined_call_operand.vmem [shape: f32[8,1], index: 3, kind: input, shape index: {}]
  %s4 = inlined_call_operand.vmem [shape: bf16[8,16], index: 4, kind: input, shape index: {}]
  %s5 = inlined_call_operand.hbm [shape: bf16[128,128], index: 5, kind: input, shape index: {}]
  %s6 = inlined_call_operand.vmem [shape: f32[1,128], index: 6, kind: input, shape index: {}]
  %s7 = inlined_call_operand.hbm [shape: bf16[128,128], index: 7, kind: input, shape index: {}]
  %s8 = inlined_call_operand.hbm [shape: bf16[128,128], index: 8, kind: input, shape index: {}]
  %s9 = inlined_call_operand.hbm [shape: f32[1,128], index: 9, kind: input, shape index: {}]
  %s10 = inlined_call_operand.hbm [shape: bf16[128,512], index: 10, kind: input, shape index: {}]
  %s11 = inlined_call_operand.hbm [shape: bf16[128,512], index: 11, kind: input, shape index: {}]
  %s12 = inlined_call_operand.hbm [shape: f32[1,512], index: 12, kind: input, shape index: {}]
  %s13 = inlined_call_operand.vmem [shape: bf16[256,128], index: 13, kind: input, shape index: {}]
  %s14 = inlined_call_operand.hbm [shape: f32[1,128], index: 14, kind: input, shape index: {}]
  %s15 = inlined_call_operand.vmem [shape: f32[1,128], index: 15, kind: input, shape index: {}]
  %s16 = inlined_call_operand.<no memory space> [shape: f32[1,1], index: 16, kind: input, shape index: {}]
  %s17 = inlined_call_operand.hbm [shape: f32[8,128], index: 17, kind: output, shape index: {0}]
  %s18 = inlined_call_operand.vmem [shape: f32[8,1], index: 18, kind: output, shape index: {1}]
  %19 = xla_tuple %s17, %s18
  %s20 = sld [smem:[#allocation0]]
  $region118: #{graph_encoder_forward.1} parent=0
    _
  %s22 = ssub.s32 1, %s20
  %s23 = scalar_select 0, %s22, %s20
  %v24 = vstv %s16
  %25 = vst [vmem:[#allocation2] sm:$0x1] %v24
  $region1: #{graph_encoder_forward.1} parent=0
    #allocation3 [shape = 'u8[32768]{0}', space=vmem, size = 0x8000, scoped, tag = 'input window, operand 5, single buffered']
    #allocation4 [shape = 's32[1]{0}', space=sflag, size = 0x4, scoped, tag = 'scoped memory for graph_encoder_forward.1']
    #allocation5 [shape = 's32[1]{0}', space=sflag, size = 0x4, scoped, tag = 'scoped memory for graph_encoder_forward.1']
    #allocation6 [shape = 'u8[32768]{0}', space=vmem, size = 0x8000, scoped, tag = 'input window, operand 7, single buffered']
    #allocation7 [shape = 's32[1]{0}', space=sflag, size = 0x4, scoped, tag = 'scoped memory for graph_encoder_forward.1']
    #allocation8 [shape = 'u8[32768]{0}', space=vmem, size = 0x8000, scoped, tag = 'input window, operand 8, single buffered']
    #allocation9 [shape = 'u8[512]{0}', space=vmem, size = 0x400, scoped, tag = 'input window, operand 9, single buffered']
    #allocation10 [shape = 's32[1]{0}', space=sflag, size = 0x4, scoped, tag = 'scoped memory for graph_encoder_forward.1']
    #allocation11 [shape = 'u8[131072]{0}', space=vmem, size = 0x20000, scoped, tag = 'input window, operand 10, single buffered']
    #allocation12 [shape = 'u8[131072]{0}', space=vmem, size = 0x20000, scoped, tag = 'input window, operand 11, single buffered']
    #allocation13 [shape = 's32[1]{0}', space=sflag, size = 0x4, scoped, tag = 'scoped memory for graph_encoder_forward.1']
    #allocation14 [shape = 'u8[2048]{0}', space=vmem, size = 0x800, scoped, tag = 'input window, operand 12, single buffered']
    #allocation15 [shape = 'u8[512]{0}', space=vmem, size = 0x400, scoped, tag = 'input window, operand 14, single buffered']
    #allocation16 [shape = 's32[1]{0}', space=sflag, size = 0x4, scoped, tag = 'scoped memory for graph_encoder_forward.1']
    #allocation17 [shape = 'u8[4096]{0}', space=vmem, size = 0x1000, scoped, tag = 'output window, operand 0, single buffered']
    %26 = vsyncpa [#allocation4], 0
    %27 = vsyncpa [#allocation7], 0
    %28 = vsyncpa [#allocation10], 0
    %29 = vsyncpa [#allocation13], 0
    %30 = vsyncpa [#allocation16], 0
    %31 = vsyncpa [#allocation5], 0
    // Predicated region
    $region2: #{graph_encoder_forward.1} parent=1 // pred_check
      _
    $region3: #{graph_encoder_forward.1} parent=1 // pred_check_branch
      %33 = sbr.rel (0) target = $region5
    $region4: #{graph_encoder_forward.1} parent=1 // pred_region
      _
    $region5: #{graph_encoder_forward.1} parent=1 // pred_fallthru
      _
    // Predicated region
    $region6: #{graph_encoder_forward.1} parent=1 // pred_check
      _
    $region7: #{graph_encoder_forward.1} parent=1 // pred_check_branch
      %35 = sbr.rel (0) target = $region9
    $region8: #{graph_encoder_forward.1} parent=1 // pred_region
      _
    $region9: #{graph_encoder_forward.1} parent=1 // pred_fallthru
      _
    // Predicated region
    $region10: #{graph_encoder_forward.1} parent=1 // pred_check
      _
    $region11: #{graph_encoder_forward.1} parent=1 // pred_check_branch
      %37 = sbr.rel (0) target = $region13
    $region12: #{graph_encoder_forward.1} parent=1 // pred_region
      _
    $region13: #{graph_encoder_forward.1} parent=1 // pred_fallthru
      _
    // Predicated region
    $region14: #{graph_encoder_forward.1} parent=1 // pred_check
      _
    $region15: #{graph_encoder_forward.1} parent=1 // pred_check_branch
      %39 = sbr.rel (0) target = $region17
    $region16: #{graph_encoder_forward.1} parent=1 // pred_region
      _
    $region17: #{graph_encoder_forward.1} parent=1 // pred_fallthru
      _
    // Predicated region
    $region18: #{graph_encoder_forward.1} parent=1 // pred_check
      _
    $region19: #{graph_encoder_forward.1} parent=1 // pred_check_branch
      %41 = sbr.rel (0) target = $region21
    $region20: #{graph_encoder_forward.1} parent=1 // pred_region
      _
    $region21: #{graph_encoder_forward.1} parent=1 // pred_fallthru
      _
    // Predicated region
    $region22: #{graph_encoder_forward.1} parent=1 // pred_check
      _
    $region23: #{graph_encoder_forward.1} parent=1 // pred_check_branch
      %43 = sbr.rel (0) target = $region25
    $region24: #{graph_encoder_forward.1} parent=1 // pred_region
      %s45 = ssub.s32 1024, 1024
      %46 = vsyncadd [#allocation4], %s45
      %s47 = sshll.u32 [#allocation3], 4
      %s48 = int_to_ptr.vmem [resolvable:$true] %s47
      %53 = dma.hbm_to_vmem [thread:$0]  %s5, 1024, %s48, [#allocation4], 64, 64, 4
    $region25: #{graph_encoder_forward.1} parent=1 // pred_fallthru
      _
    // Predicated region
    $region26: #{graph_encoder_forward.1} parent=1 // pred_check
      _
    $region27: #{graph_encoder_forward.1} parent=1 // pred_check_branch
      %55 = sbr.rel (0) target = $region29
    $region28: #{graph_encoder_forward.1} parent=1 // pred_region
      _
    $region29: #{graph_encoder_forward.1} parent=1 // pred_fallthru
      _
    // Predicated region
    $region30: #{graph_encoder_forward.1} parent=1 // pred_check
      _
    $region31: #{graph_encoder_forward.1} parent=1 // pred_check_branch
      %57 = sbr.rel (0) target = $region33
    $region32: #{graph_encoder_forward.1} parent=1 // pred_region
      %s59 = ssub.s32 1024, 1024
      %60 = vsyncadd [#allocation7], %s59
      %s61 = sshll.u32 [#allocation6], 4
      %s62 = int_to_ptr.vmem [resolvable:$true] %s61
      %67 = dma.hbm_to_vmem [thread:$0]  %s7, 1024, %s62, [#allocation7], 64, 64, 4
    $region33: #{graph_encoder_forward.1} parent=1 // pred_fallthru
      _
    // Predicated region
    $region34: #{graph_encoder_forward.1} parent=1 // pred_check
      _
    $region35: #{graph_encoder_forward.1} parent=1 // pred_check_branch
      %69 = sbr.rel (0) target = $region37
    $region36: #{graph_encoder_forward.1} parent=1 // pred_region
      %s71 = ssub.s32 1024, 1024
      %72 = vsyncadd [#allocation7], %s71
      %s73 = sshll.u32 [#allocation8], 4
      %s74 = int_to_ptr.vmem [resolvable:$true] %s73
      %79 = dma.hbm_to_vmem [thread:$0]  %s8, 1024, %s74, [#allocation7], 64, 64, 4
    $region37: #{graph_encoder_forward.1} parent=1 // pred_fallthru
      _
    // Predicated region
    $region38: #{graph_encoder_forward.1} parent=1 // pred_check
      _
    $region39: #{graph_encoder_forward.1} parent=1 // pred_check_branch
      %81 = sbr.rel (0) target = $region41
    $region40: #{graph_encoder_forward.1} parent=1 // pred_region
      %s83 = ssub.s32 16, 16
      %84 = vsyncadd [#allocation10], %s83
      %s86 = sshll.u32 [#allocation9], 4
      %s87 = int_to_ptr.vmem [resolvable:$true] %s86
      %89 = dma.hbm_to_vmem [thread:$0]  %s9, 16, %s87, [#allocation10]
    $region41: #{graph_encoder_forward.1} parent=1 // pred_fallthru
      _
    // Predicated region
    $region42: #{graph_encoder_forward.1} parent=1 // pred_check
      _
    $region43: #{graph_encoder_forward.1} parent=1 // pred_check_branch
      %91 = sbr.rel (0) target = $region45
    $region44: #{graph_encoder_forward.1} parent=1 // pred_region
      %s93 = ssub.s32 4096, 4096
      %94 = vsyncadd [#allocation10], %s93
      %s95 = sshll.u32 [#allocation11], 4
      %s96 = int_to_ptr.vmem [resolvable:$true] %s95
      %101 = dma.hbm_to_vmem [thread:$0]  %s10, 4096, %s96, [#allocation10], 256, 256, 16
    $region45: #{graph_encoder_forward.1} parent=1 // pred_fallthru
      _
    // Predicated region
    $region46: #{graph_encoder_forward.1} parent=1 // pred_check
      _
    $region47: #{graph_encoder_forward.1} parent=1 // pred_check_branch
      %103 = sbr.rel (0) target = $region49
    $region48: #{graph_encoder_forward.1} parent=1 // pred_region
      %s105 = ssub.s32 4096, 4096
      %106 = vsyncadd [#allocation13], %s105
      %s107 = sshll.u32 [#allocation12], 4
      %s108 = int_to_ptr.vmem [resolvable:$true] %s107
      %113 = dma.hbm_to_vmem [thread:$0]  %s11, 4096, %s108, [#allocation13], 256, 256, 16
    $region49: #{graph_encoder_forward.1} parent=1 // pred_fallthru
      _
    // Predicated region
    $region50: #{graph_encoder_forward.1} parent=1 // pred_check
      _
    $region51: #{graph_encoder_forward.1} parent=1 // pred_check_branch
      %115 = sbr.rel (0) target = $region53
    $region52: #{graph_encoder_forward.1} parent=1 // pred_region
      %s117 = ssub.s32 64, 64
      %118 = vsyncadd [#allocation13], %s117
      %s120 = sshll.u32 [#allocation14], 4
      %s121 = int_to_ptr.vmem [resolvable:$true] %s120
      %123 = dma.hbm_to_vmem [thread:$0]  %s12, 64, %s121, [#allocation13]
    $region53: #{graph_encoder_forward.1} parent=1 // pred_fallthru
      _
    // Predicated region
    $region54: #{graph_encoder_forward.1} parent=1 // pred_check
      _
    $region55: #{graph_encoder_forward.1} parent=1 // pred_check_branch
      %125 = sbr.rel (0) target = $region57
    $region56: #{graph_encoder_forward.1} parent=1 // pred_region
      _
    $region57: #{graph_encoder_forward.1} parent=1 // pred_fallthru
      _
    // Predicated region
    $region58: #{graph_encoder_forward.1} parent=1 // pred_check
      _
    $region59: #{graph_encoder_forward.1} parent=1 // pred_check_branch
      %127 = sbr.rel (0) target = $region61
    $region60: #{graph_encoder_forward.1} parent=1 // pred_region
      %s129 = ssub.s32 16, 16
      %130 = vsyncadd [#allocation16], %s129
      %s132 = sshll.u32 [#allocation15], 4
      %s133 = int_to_ptr.vmem [resolvable:$true] %s132
      %135 = dma.hbm_to_vmem [thread:$0]  %s14, 16, %s133, [#allocation16]
    $region61: #{graph_encoder_forward.1} parent=1 // pred_fallthru
      _
    // Predicated region
    $region62: #{graph_encoder_forward.1} parent=1 // pred_check
      _
    $region63: #{graph_encoder_forward.1} parent=1 // pred_check_branch
      %137 = sbr.rel (0) target = $region65
    $region64: #{graph_encoder_forward.1} parent=1 // pred_region
      _
    $region65: #{graph_encoder_forward.1} parent=1 // pred_fallthru
      _
    // Predicated region
    $region66: #{graph_encoder_forward.1} parent=1 // pred_check
      _
    $region67: #{graph_encoder_forward.1} parent=1 // pred_check_branch
      %139 = sbr.rel (0) target = $region69
    $region68: #{graph_encoder_forward.1} parent=1 // pred_region
      _
    $region69: #{graph_encoder_forward.1} parent=1 // pred_fallthru
      _
    // Predicated region
    $region70: #{graph_encoder_forward.1} parent=1 // pred_check
      _
    $region71: #{graph_encoder_forward.1} parent=1 // pred_check_branch
      %141 = sbr.rel (0) target = $region73
    $region72: #{graph_encoder_forward.1} parent=1 // pred_region
      %142 = dma.done [#allocation4], 1024
    $region73: #{graph_encoder_forward.1} parent=1 // pred_fallthru
      _
    // Predicated region
    $region74: #{graph_encoder_forward.1} parent=1 // pred_check
      _
    $region75: #{graph_encoder_forward.1} parent=1 // pred_check_branch
      %144 = sbr.rel (0) target = $region77
    $region76: #{graph_encoder_forward.1} parent=1 // pred_region
      %145 = dma.done [#allocation7], 1024
    $region77: #{graph_encoder_forward.1} parent=1 // pred_fallthru
      _
    // Predicated region
    $region78: #{graph_encoder_forward.1} parent=1 // pred_check
      _
    $region79: #{graph_encoder_forward.1} parent=1 // pred_check_branch
      %147 = sbr.rel (0) target = $region81
    $region80: #{graph_encoder_forward.1} parent=1 // pred_region
      %148 = dma.done [#allocation7], 1024
    $region81: #{graph_encoder_forward.1} parent=1 // pred_fallthru
      _
    // Predicated region
    $region82: #{graph_encoder_forward.1} parent=1 // pred_check
      _
    $region83: #{graph_encoder_forward.1} parent=1 // pred_check_branch
      %150 = sbr.rel (0) target = $region85
    $region84: #{graph_encoder_forward.1} parent=1 // pred_region
      %151 = dma.done [#allocation10], 16
    $region85: #{graph_encoder_forward.1} parent=1 // pred_fallthru
      _
    // Predicated region
    $region86: #{graph_encoder_forward.1} parent=1 // pred_check
      _
    $region87: #{graph_encoder_forward.1} parent=1 // pred_check_branch
      %153 = sbr.rel (0) target = $region89
    $region88: #{graph_encoder_forward.1} parent=1 // pred_region
      %154 = dma.done [#allocation10], 4096
    $region89: #{graph_encoder_forward.1} parent=1 // pred_fallthru
      _
    // Predicated region
    $region90: #{graph_encoder_forward.1} parent=1 // pred_check
      _
    $region91: #{graph_encoder_forward.1} parent=1 // pred_check_branch
      %156 = sbr.rel (0) target = $region93
    $region92: #{graph_encoder_forward.1} parent=1 // pred_region
      %157 = dma.done [#allocation13], 4096
    $region93: #{graph_encoder_forward.1} parent=1 // pred_fallthru
      _
    // Predicated region
    $region94: #{graph_encoder_forward.1} parent=1 // pred_check
      _
    $region95: #{graph_encoder_forward.1} parent=1 // pred_check_branch
      %159 = sbr.rel (0) target = $region97
    $region96: #{graph_encoder_forward.1} parent=1 // pred_region
      %160 = dma.done [#allocation13], 64
    $region97: #{graph_encoder_forward.1} parent=1 // pred_fallthru
      _
    // Predicated region
    $region98: #{graph_encoder_forward.1} parent=1 // pred_check
      _
    $region99: #{graph_encoder_forward.1} parent=1 // pred_check_branch
      %162 = sbr.rel (0) target = $region101
    $region100: #{graph_encoder_forward.1} parent=1 // pred_region
      %163 = dma.done [#allocation16], 16
    $region101: #{graph_encoder_forward.1} parent=1 // pred_fallthru
      _
    %v165 = vld [vmem:[%s0] sm:$0xf]
    %v166 = vld [vmem:[%s0 + $0x4] sm:$0xf]
    %v167 = vld [vmem:[%s0 + $0x8] sm:$0xf]
    %v168 = vld [vmem:[#allocation3] sm:$0xf]
    %v169 = vld [vmem:[#allocation3 + $0x4] sm:$0xf]
    %v170 = vld [vmem:[#allocation3 + $0x8] sm:$0xf]
    %v171 = vld [vmem:[#allocation3 + $0xc] sm:$0xf]
    %v172 = vld [vmem:[#allocation3 + $0x10] sm:$0xf]
    %v173 = vld [vmem:[#allocation3 + $0x14] sm:$0xf]
    %v174 = vld [vmem:[#allocation3 + $0x18] sm:$0xf]
    %v175 = vld [vmem:[#allocation3 + $0x1c] sm:$0xf]
    %v176 = vld [vmem:[#allocation3 + $0x20] sm:$0xf]
    %v177 = vld [vmem:[#allocation3 + $0x24] sm:$0xf]
    %v178 = vld [vmem:[#allocation3 + $0x28] sm:$0xf]
    %v179 = vld [vmem:[#allocation3 + $0x2c] sm:$0xf]
    %v180 = vld [vmem:[#allocation3 + $0x30] sm:$0xf]
    %v181 = vld [vmem:[#allocation3 + $0x34] sm:$0xf]
    %v182 = vld [vmem:[#allocation3 + $0x38] sm:$0xf]
    %v183 = vld [vmem:[#allocation3 + $0x3c] sm:$0xf]
    %v184 = vld [vmem:[%s6] sm:$0x1]
    %v186 = vlaneseq
    %v187 = vshrl.u32 %v186, 7
    %v188 = vsub.s32 0, %v187
    %v189 = vrot.slane %v184, %v188
    %v194 = vunpack.c.l.b16 %v165
    %v195 = vunpack.c.l.b16 %v166
    %v196 = vunpack.c.l.b16 %v167
    %v197 = vpack.c.b16 %v195, %v194
    %v198 = vpack.c.b16 %v196, %v196
    %v217 = vunpack.c.l.b16 %v168
    %v218 = vunpack.c.l.b16 %v169
    %v219 = vunpack.c.l.b16 %v170
    %v220 = vunpack.c.l.b16 %v171
    %v221 = vunpack.c.l.b16 %v172
    %v222 = vunpack.c.l.b16 %v173
    %v223 = vunpack.c.l.b16 %v174
    %v224 = vunpack.c.l.b16 %v175
    %v225 = vunpack.c.l.b16 %v176
    %v226 = vunpack.c.l.b16 %v177
    %v227 = vunpack.c.l.b16 %v178
    %v228 = vunpack.c.l.b16 %v179
    %v229 = vunpack.c.l.b16 %v180
    %v230 = vunpack.c.l.b16 %v181
    %v231 = vunpack.c.l.b16 %v182
    %v232 = vunpack.c.l.b16 %v183
    %v233 = vpack.c.b16 %v218, %v217
    %v234 = vpack.c.b16 %v220, %v219
    %v235 = vpack.c.b16 %v222, %v221
    %v236 = vpack.c.b16 %v224, %v223
    %v237 = vpack.c.b16 %v226, %v225
    %v238 = vpack.c.b16 %v228, %v227
    %v239 = vpack.c.b16 %v230, %v229
    %v240 = vpack.c.b16 %v232, %v231
    %249 = vmatprep.subr.bf16.mxu0 0
    %250 = vmatpush1.bf16.msra.mxu0 %v240
    %251 = vmatprep.subr.bf16.mxu0 0
    %252 = vmatpush1.bf16.msra.mxu0 %v239
    %253 = vmatprep.subr.bf16.mxu0 0
    %254 = vmatpush1.bf16.msra.mxu0 %v238
    %255 = vmatprep.subr.bf16.mxu0 0
    %256 = vmatpush1.bf16.msra.mxu0 %v237
    %257 = vmatprep.subr.bf16.mxu0 0
    %258 = vmatpush1.bf16.msra.mxu0 %v236
    %259 = vmatprep.subr.bf16.mxu0 0
    %260 = vmatpush1.bf16.msra.mxu0 %v235
    %261 = vmatprep.subr.bf16.mxu0 0
    %262 = vmatpush1.bf16.msra.mxu0 %v234
    %263 = vmatprep.subr.bf16.mxu0 0
    %264 = vmatpush1.bf16.msra.mxu0 %v233
    %265 = vmatprep.subr.bf16.mxu0 0
    %266 = vmatpush2.bf16.msra.mxu0 0
    %267 = vmatprep.subr.bf16.mxu0 0
    %268 = vmatpush2.bf16.msra.mxu0 0
    %269 = vmatprep.subr.bf16.mxu0 0
    %270 = vmatpush2.bf16.msra.mxu0 0
    %271 = vmatprep.subr.bf16.mxu0 0
    %272 = vmatpush2.bf16.msra.mxu0 0
    %273 = vmatprep.subr.bf16.mxu0 0
    %274 = vmatpush2.bf16.msra.mxu0 0
    %275 = vmatprep.subr.bf16.mxu0 0
    %276 = vmatpush2.bf16.msra.mxu0 0
    %277 = vmatprep.subr.bf16.mxu0 0
    %278 = vmatpush2.bf16.msra.mxu0 0
    %279 = vmatprep.subr.bf16.mxu0 0
    %280 = vmatpush2.bf16.msra.mxu0 0
    %281 = vmatprep.mubr.bf16.mxu0 0
    %282 = vmatmul.mubr.bf16.gmra.mxu0 %v197
    %v283 = vpop.f32.mrf.mxu0
    %v284 = vadd.f32 %v189, %v283
    %v285 = vpop.f32.mrf.mxu0
    %v286 = vpop.f32.mrf.mxu0
    %v287 = vadd.f32 %v189, %v286
    %v288 = vpop.f32.mrf.mxu0
    %289 = vmatprep.mubr.bf16.mxu0 0
    %290 = vmatmul.mubr.bf16.gmra.mxu0 %v198
    %v291 = vpop.f32.mrf.mxu0
    %v292 = vadd.f32 %v189, %v291
    %v293 = vpop.f32.mrf.mxu0
    %v294 = vpop.f32.mrf.mxu0
    %v295 = vpop.f32.mrf.mxu0
    %296 = vdwg.mxu0
    %v297 = vpack.c.bf16 %v287, %v284
    %v298 = vpack.c.bf16 %v292, %v292
    %v299 = vld [vmem:[%s1] sm:$0xf]
    %v300 = vld [vmem:[%s1 + $0x4] sm:$0xf]
    %v301 = vld [vmem:[%s1 + $0x8] sm:$0xf]
    %v305 = vunpack.c.l.b16 %v299
    %v306 = vunpack.c.l.b16 %v300
    %v307 = vunpack.c.l.b16 %v301
    %v308 = vpack.c.b16 %v306, %v305
    %v309 = vpack.c.b16 %v307, %v307
    %vm310 = vcmask 195584
    %v312 = vsel %vm310, %v308, 0
    %v315 = vsel %vm310, %v309, 0
    %vm317 = vcmask 1043456
    %v319 = vsel %vm317, %v298, 0
    %321 = vmatprep.subr.bf16.mxu0 0
    %322 = vmatpush1.bf16.msra.mxu0 0
    %323 = vmatprep.subr.bf16.mxu0 0
    %324 = vmatpush1.bf16.msra.mxu0 0
    %325 = vmatprep.subr.bf16.mxu0 0
    %326 = vmatpush1.bf16.msra.mxu0 0
    %327 = vmatprep.subr.bf16.mxu0 0
    %328 = vmatpush1.bf16.msra.mxu0 0
    %329 = vmatprep.subr.bf16.mxu0 0
    %330 = vmatpush1.bf16.msra.mxu0 0
    %331 = vmatprep.subr.bf16.mxu0 0
    %332 = vmatpush1.bf16.msra.mxu0 0
    %333 = vmatprep.subr.bf16.mxu0 0
    %334 = vmatpush1.bf16.msra.mxu0 %v319
    %335 = vmatprep.subr.bf16.mxu0 0
    %336 = vmatpush1.bf16.msra.mxu0 %v297
    %337 = vmatprep.subr.bf16.mxu0 0
    %338 = vmatpush2.bf16.msra.mxu0 0
    %339 = vmatprep.subr.bf16.mxu0 0
    %340 = vmatpush2.bf16.msra.mxu0 0
    %341 = vmatprep.subr.bf16.mxu0 0
    %342 = vmatpush2.bf16.msra.mxu0 0
    %343 = vmatprep.subr.bf16.mxu0 0
    %344 = vmatpush2.bf16.msra.mxu0 0
    %345 = vmatprep.subr.bf16.mxu0 0
    %346 = vmatpush2.bf16.msra.mxu0 0
    %347 = vmatprep.subr.bf16.mxu0 0
    %348 = vmatpush2.bf16.msra.mxu0 0
    %349 = vmatprep.subr.bf16.mxu0 0
    %350 = vmatpush2.bf16.msra.mxu0 0
    %351 = vmatprep.subr.bf16.mxu0 0
    %352 = vmatpush2.bf16.msra.mxu0 0
    %353 = vmatprep.mubr.bf16.mxu0 0
    %354 = vmatmul.mubr.bf16.gmra.mxu0 %v312
    %v355 = vpop.f32.mrf.mxu0
    %v356 = vadd.f32 0.0, %v355
    %v357 = vpop.f32.mrf.mxu0
    %v358 = vpop.f32.mrf.mxu0
    %v359 = vadd.f32 0.0, %v358
    %v360 = vpop.f32.mrf.mxu0
    %361 = vmatprep.mubr.bf16.mxu0 0
    %362 = vmatmul.mubr.bf16.gmra.mxu0 %v315
    %v363 = vpop.f32.mrf.mxu0
    %v364 = vadd.f32 0.0, %v363
    %v365 = vpop.f32.mrf.mxu0
    %v366 = vpop.f32.mrf.mxu0
    %v367 = vpop.f32.mrf.mxu0
    %368 = vdwg.mxu0
    %v369 = vld [vmem:[#allocation6] sm:$0xf]
    %v370 = vld [vmem:[#allocation6 + $0x4] sm:$0xf]
    %v371 = vld [vmem:[#allocation6 + $0x8] sm:$0xf]
    %v372 = vld [vmem:[#allocation6 + $0xc] sm:$0xf]
    %v373 = vld [vmem:[#allocation6 + $0x10] sm:$0xf]
    %v374 = vld [vmem:[#allocation6 + $0x14] sm:$0xf]
    %v375 = vld [vmem:[#allocation6 + $0x18] sm:$0xf]
    %v376 = vld [vmem:[#allocation6 + $0x1c] sm:$0xf]
    %v377 = vld [vmem:[#allocation6 + $0x20] sm:$0xf]
    %v378 = vld [vmem:[#allocation6 + $0x24] sm:$0xf]
    %v379 = vld [vmem:[#allocation6 + $0x28] sm:$0xf]
    %v380 = vld [vmem:[#allocation6 + $0x2c] sm:$0xf]
    %v381 = vld [vmem:[#allocation6 + $0x30] sm:$0xf]
    %v382 = vld [vmem:[#allocation6 + $0x34] sm:$0xf]
    %v383 = vld [vmem:[#allocation6 + $0x38] sm:$0xf]
    %v384 = vld [vmem:[#allocation6 + $0x3c] sm:$0xf]
    %v385 = vpack.c.bf16 %v359, %v356
    %v386 = vpack.c.bf16 %v364, %v364
    %v387 = vld [vmem:[#allocation8] sm:$0xf]
    %v388 = vld [vmem:[#allocation8 + $0x4] sm:$0xf]
    %v389 = vld [vmem:[#allocation8 + $0x8] sm:$0xf]
    %v390 = vld [vmem:[#allocation8 + $0xc] sm:$0xf]
    %v391 = vld [vmem:[#allocation8 + $0x10] sm:$0xf]
    %v392 = vld [vmem:[#allocation8 + $0x14] sm:$0xf]
    %v393 = vld [vmem:[#allocation8 + $0x18] sm:$0xf]
    %v394 = vld [vmem:[#allocation8 + $0x1c] sm:$0xf]
    %v395 = vld [vmem:[#allocation8 + $0x20] sm:$0xf]
    %v396 = vld [vmem:[#allocation8 + $0x24] sm:$0xf]
    %v397 = vld [vmem:[#allocation8 + $0x28] sm:$0xf]
    %v398 = vld [vmem:[#allocation8 + $0x2c] sm:$0xf]
    %v399 = vld [vmem:[#allocation8 + $0x30] sm:$0xf]
    %v400 = vld [vmem:[#allocation8 + $0x34] sm:$0xf]
    %v401 = vld [vmem:[#allocation8 + $0x38] sm:$0xf]
    %v402 = vld [vmem:[#allocation8 + $0x3c] sm:$0xf]
    %v419 = vunpack.c.l.b16 %v387
    %v420 = vunpack.c.l.b16 %v388
    %v421 = vunpack.c.l.b16 %v389
    %v422 = vunpack.c.l.b16 %v390
    %v423 = vunpack.c.l.b16 %v391
    %v424 = vunpack.c.l.b16 %v392
    %v425 = vunpack.c.l.b16 %v393
    %v426 = vunpack.c.l.b16 %v394
    %v427 = vunpack.c.l.b16 %v395
    %v428 = vunpack.c.l.b16 %v396
    %v429 = vunpack.c.l.b16 %v397
    %v430 = vunpack.c.l.b16 %v398
    %v431 = vunpack.c.l.b16 %v399
    %v432 = vunpack.c.l.b16 %v400
    %v433 = vunpack.c.l.b16 %v401
    %v434 = vunpack.c.l.b16 %v402
    %v435 = vpack.c.b16 %v420, %v419
    %v436 = vpack.c.b16 %v422, %v421
    %v437 = vpack.c.b16 %v424, %v423
    %v438 = vpack.c.b16 %v426, %v425
    %v439 = vpack.c.b16 %v428, %v427
    %v440 = vpack.c.b16 %v430, %v429
    %v441 = vpack.c.b16 %v432, %v431
    %v442 = vpack.c.b16 %v434, %v433
    %451 = vmatprep.subr.bf16.mxu0 0
    %452 = vmatpush1.bf16.msra.mxu0 %v442
    %453 = vmatprep.subr.bf16.mxu0 0
    %454 = vmatpush1.bf16.msra.mxu0 %v441
    %455 = vmatprep.subr.bf16.mxu0 0
    %456 = vmatpush1.bf16.msra.mxu0 %v440
    %457 = vmatprep.subr.bf16.mxu0 0
    %458 = vmatpush1.bf16.msra.mxu0 %v439
    %459 = vmatprep.subr.bf16.mxu0 0
    %460 = vmatpush1.bf16.msra.mxu0 %v438
    %461 = vmatprep.subr.bf16.mxu0 0
    %462 = vmatpush1.bf16.msra.mxu0 %v437
    %463 = vmatprep.subr.bf16.mxu0 0
    %464 = vmatpush1.bf16.msra.mxu0 %v436
    %465 = vmatprep.subr.bf16.mxu0 0
    %466 = vmatpush1.bf16.msra.mxu0 %v435
    %467 = vmatprep.subr.bf16.mxu0 0
    %468 = vmatpush2.bf16.msra.mxu0 0
    %469 = vmatprep.subr.bf16.mxu0 0
    %470 = vmatpush2.bf16.msra.mxu0 0
    %471 = vmatprep.subr.bf16.mxu0 0
    %472 = vmatpush2.bf16.msra.mxu0 0
    %473 = vmatprep.subr.bf16.mxu0 0
    %474 = vmatpush2.bf16.msra.mxu0 0
    %475 = vmatprep.subr.bf16.mxu0 0
    %476 = vmatpush2.bf16.msra.mxu0 0
    %477 = vmatprep.subr.bf16.mxu0 0
    %478 = vmatpush2.bf16.msra.mxu0 0
    %479 = vmatprep.subr.bf16.mxu0 0
    %480 = vmatpush2.bf16.msra.mxu0 0
    %481 = vmatprep.subr.bf16.mxu0 0
    %482 = vmatpush2.bf16.msra.mxu0 0
    %483 = vmatprep.mubr.bf16.mxu0 0
    %484 = vmatmul.mubr.bf16.gmra.mxu0 %v385
    %v485 = vpop.f32.mrf.mxu0
    %v486 = vadd.f32 0.0, %v485
    %v487 = vpop.f32.mrf.mxu0
    %v488 = vpop.f32.mrf.mxu0
    %v489 = vadd.f32 0.0, %v488
    %v490 = vpop.f32.mrf.mxu0
    %491 = vmatprep.mubr.bf16.mxu0 0
    %492 = vmatmul.mubr.bf16.gmra.mxu0 %v386
    %v493 = vpop.f32.mrf.mxu0
    %v494 = vadd.f32 0.0, %v493
    %v495 = vpop.f32.mrf.mxu0
    %v496 = vpop.f32.mrf.mxu0
    %v497 = vpop.f32.mrf.mxu0
    %498 = vdwg.mxu0
    %v515 = vunpack.c.l.b16 %v369
    %v516 = vunpack.c.l.b16 %v370
    %v517 = vunpack.c.l.b16 %v371
    %v518 = vunpack.c.l.b16 %v372
    %v519 = vunpack.c.l.b16 %v373
    %v520 = vunpack.c.l.b16 %v374
    %v521 = vunpack.c.l.b16 %v375
    %v522 = vunpack.c.l.b16 %v376
    %v523 = vunpack.c.l.b16 %v377
    %v524 = vunpack.c.l.b16 %v378
    %v525 = vunpack.c.l.b16 %v379
    %v526 = vunpack.c.l.b16 %v380
    %v527 = vunpack.c.l.b16 %v381
    %v528 = vunpack.c.l.b16 %v382
    %v529 = vunpack.c.l.b16 %v383
    %v530 = vunpack.c.l.b16 %v384
    %v531 = vpack.c.b16 %v516, %v515
    %v532 = vpack.c.b16 %v518, %v517
    %v533 = vpack.c.b16 %v520, %v519
    %v534 = vpack.c.b16 %v522, %v521
    %v535 = vpack.c.b16 %v524, %v523
    %v536 = vpack.c.b16 %v526, %v525
    %v537 = vpack.c.b16 %v528, %v527
    %v538 = vpack.c.b16 %v530, %v529
    %547 = vmatprep.subr.bf16.mxu0 0
    %548 = vmatpush1.bf16.msra.mxu0 %v538
    %549 = vmatprep.subr.bf16.mxu0 0
    %550 = vmatpush1.bf16.msra.mxu0 %v537
    %551 = vmatprep.subr.bf16.mxu0 0
    %552 = vmatpush1.bf16.msra.mxu0 %v536
    %553 = vmatprep.subr.bf16.mxu0 0
    %554 = vmatpush1.bf16.msra.mxu0 %v535
    %555 = vmatprep.subr.bf16.mxu0 0
    %556 = vmatpush1.bf16.msra.mxu0 %v534
    %557 = vmatprep.subr.bf16.mxu0 0
    %558 = vmatpush1.bf16.msra.mxu0 %v533
    %559 = vmatprep.subr.bf16.mxu0 0
    %560 = vmatpush1.bf16.msra.mxu0 %v532
    %561 = vmatprep.subr.bf16.mxu0 0
    %562 = vmatpush1.bf16.msra.mxu0 %v531
    %563 = vmatprep.subr.bf16.mxu0 0
    %564 = vmatpush2.bf16.msra.mxu0 0
    %565 = vmatprep.subr.bf16.mxu0 0
    %566 = vmatpush2.bf16.msra.mxu0 0
    %567 = vmatprep.subr.bf16.mxu0 0
    %568 = vmatpush2.bf16.msra.mxu0 0
    %569 = vmatprep.subr.bf16.mxu0 0
    %570 = vmatpush2.bf16.msra.mxu0 0
    %571 = vmatprep.subr.bf16.mxu0 0
    %572 = vmatpush2.bf16.msra.mxu0 0
    %573 = vmatprep.subr.bf16.mxu0 0
    %574 = vmatpush2.bf16.msra.mxu0 0
    %575 = vmatprep.subr.bf16.mxu0 0
    %576 = vmatpush2.bf16.msra.mxu0 0
    %577 = vmatprep.subr.bf16.mxu0 0
    %578 = vmatpush2.bf16.msra.mxu0 0
    %579 = vmatprep.mubr.bf16.mxu0 0
    %580 = vmatmul.mubr.bf16.gmra.mxu0 %v297
    %v581 = vpop.f32.mrf.mxu0
    %v582 = vadd.f32 %v486, %v581
    %v583 = vpop.f32.mrf.mxu0
    %v584 = vpop.f32.mrf.mxu0
    %v585 = vadd.f32 %v489, %v584
    %v586 = vpop.f32.mrf.mxu0
    %587 = vmatprep.mubr.bf16.mxu0 0
    %588 = vmatmul.mubr.bf16.gmra.mxu0 %v298
    %v589 = vpop.f32.mrf.mxu0
    %v590 = vadd.f32 %v494, %v589
    %v591 = vpop.f32.mrf.mxu0
    %v592 = vpop.f32.mrf.mxu0
    %v593 = vpop.f32.mrf.mxu0
    %594 = vdwg.mxu0
    %v595 = vld [vmem:[#allocation9] sm:$0x1]
    %v597 = vlaneseq
    %v598 = vshrl.u32 %v597, 7
    %v599 = vsub.s32 0, %v598
    %v600 = vrot.slane %v595, %v599
    %v602 = vadd.f32 %v582, %v600
    %v603 = vadd.f32 %v585, %v600
    %v604 = vadd.f32 %v590, %v600
    %v605 = vld [vmem:[%s2] sm:$0xf]
    %v606 = vpack.c.bf16 %v603, %v602
    %v607 = vpack.c.bf16 %v604, %v604
    %v609 = vsel %vm310, %v605, 0
    %v612 = vsel %vm317, %v607, 0
    %614 = vmatprep.subr.bf16.mxu0 0
    %615 = vmatpush1.bf16.msra.mxu0 0
    %616 = vmatprep.subr.bf16.mxu0 0
    %617 = vmatpush1.bf16.msra.mxu0 0
    %618 = vmatprep.subr.bf16.mxu0 0
    %619 = vmatpush1.bf16.msra.mxu0 0
    %620 = vmatprep.subr.bf16.mxu0 0
    %621 = vmatpush1.bf16.msra.mxu0 0
    %622 = vmatprep.subr.bf16.mxu0 0
    %623 = vmatpush1.bf16.msra.mxu0 0
    %624 = vmatprep.subr.bf16.mxu0 0
    %625 = vmatpush1.bf16.msra.mxu0 0
    %626 = vmatprep.subr.bf16.mxu0 0
    %627 = vmatpush1.bf16.msra.mxu0 %v612
    %628 = vmatprep.subr.bf16.mxu0 0
    %629 = vmatpush1.bf16.msra.mxu0 %v606
    %630 = vmatprep.subr.bf16.mxu0 0
    %631 = vmatpush2.bf16.msra.mxu0 0
    %632 = vmatprep.subr.bf16.mxu0 0
    %633 = vmatpush2.bf16.msra.mxu0 0
    %634 = vmatprep.subr.bf16.mxu0 0
    %635 = vmatpush2.bf16.msra.mxu0 0
    %636 = vmatprep.subr.bf16.mxu0 0
    %637 = vmatpush2.bf16.msra.mxu0 0
    %638 = vmatprep.subr.bf16.mxu0 0
    %639 = vmatpush2.bf16.msra.mxu0 0
    %640 = vmatprep.subr.bf16.mxu0 0
    %641 = vmatpush2.bf16.msra.mxu0 0
    %642 = vmatprep.subr.bf16.mxu0 0
    %643 = vmatpush2.bf16.msra.mxu0 0
    %644 = vmatprep.subr.bf16.mxu0 0
    %645 = vmatpush2.bf16.msra.mxu0 0
    %646 = vmatprep.mubr.bf16.mxu0 0
    %647 = vmatmul.mubr.bf16.gmra.mxu0 %v609
    %v648 = vpop.f32.mrf.mxu0
    %v649 = vadd.f32 0.0, %v648
    %v650 = vpop.f32.mrf.mxu0
    %v651 = vpop.f32.mrf.mxu0
    %v652 = vpop.f32.mrf.mxu0
    %653 = vdwg.mxu0
    %v654 = vld [vmem:[%s3] sm:$0xff]
    %656 = vset.pattern.permute.xlu0 0
    %657 = vperm.xlu0 %656, %v654
    %v658 = vpop.permute.xlu0 %657
    %v660 = vmul.f32 %v649, %v658
    %661 = vst [vmem:[#allocation17] sm:$0xff] %v660
    %v662 = vpack.c.bf16 %v660, %v660
    %v663 = vld [vmem:[#allocation11] sm:$0xff]
    %v664 = vld [vmem:[#allocation11 + $0x8] sm:$0xff]
    %v665 = vld [vmem:[#allocation11 + $0x10] sm:$0xff]
    %v666 = vld [vmem:[#allocation11 + $0x18] sm:$0xff]
    %v667 = vld [vmem:[#allocation11 + $0x20] sm:$0xff]
    %v668 = vld [vmem:[#allocation11 + $0x28] sm:$0xff]
    %v669 = vld [vmem:[#allocation11 + $0x30] sm:$0xff]
    %v670 = vld [vmem:[#allocation11 + $0x38] sm:$0xff]
    %v671 = vld [vmem:[#allocation11 + $0x40] sm:$0xff]
    %v672 = vld [vmem:[#allocation11 + $0x48] sm:$0xff]
    %v673 = vld [vmem:[#allocation11 + $0x50] sm:$0xff]
    %v674 = vld [vmem:[#allocation11 + $0x58] sm:$0xff]
    %v675 = vld [vmem:[#allocation11 + $0x60] sm:$0xff]
    %v676 = vld [vmem:[#allocation11 + $0x68] sm:$0xff]
    %v677 = vld [vmem:[#allocation11 + $0x70] sm:$0xff]
    %v678 = vld [vmem:[#allocation11 + $0x78] sm:$0xff]
    %v679 = vld [vmem:[#allocation11 + $0x80] sm:$0xff]
    %v680 = vld [vmem:[#allocation11 + $0x88] sm:$0xff]
    %v681 = vld [vmem:[#allocation11 + $0x90] sm:$0xff]
    %v682 = vld [vmem:[#allocation11 + $0x98] sm:$0xff]
    %v683 = vld [vmem:[#allocation11 + $0xa0] sm:$0xff]
    %v684 = vld [vmem:[#allocation11 + $0xa8] sm:$0xff]
    %v685 = vld [vmem:[#allocation11 + $0xb0] sm:$0xff]
    %v686 = vld [vmem:[#allocation11 + $0xb8] sm:$0xff]
    %v687 = vld [vmem:[#allocation11 + $0xc0] sm:$0xff]
    %v688 = vld [vmem:[#allocation11 + $0xc8] sm:$0xff]
    %v689 = vld [vmem:[#allocation11 + $0xd0] sm:$0xff]
    %v690 = vld [vmem:[#allocation11 + $0xd8] sm:$0xff]
    %v691 = vld [vmem:[#allocation11 + $0xe0] sm:$0xff]
    %v692 = vld [vmem:[#allocation11 + $0xe8] sm:$0xff]
    %v693 = vld [vmem:[#allocation11 + $0xf0] sm:$0xff]
    %v694 = vld [vmem:[#allocation11 + $0xf8] sm:$0xff]
    %v727 = vunpack.c.l.b16 %v663
    %v728 = vunpack.c.h.b16 %v663
    %v729 = vunpack.c.l.b16 %v664
    %v730 = vunpack.c.h.b16 %v664
    %v731 = vunpack.c.l.b16 %v665
    %v732 = vunpack.c.h.b16 %v665
    %v733 = vunpack.c.l.b16 %v666
    %v734 = vunpack.c.h.b16 %v666
    %v735 = vunpack.c.l.b16 %v667
    %v736 = vunpack.c.h.b16 %v667
    %v737 = vunpack.c.l.b16 %v668
    %v738 = vunpack.c.h.b16 %v668
    %v739 = vunpack.c.l.b16 %v669
    %v740 = vunpack.c.h.b16 %v669
    %v741 = vunpack.c.l.b16 %v670
    %v742 = vunpack.c.h.b16 %v670
    %v743 = vunpack.c.l.b16 %v671
    %v744 = vunpack.c.h.b16 %v671
    %v745 = vunpack.c.l.b16 %v672
    %v746 = vunpack.c.h.b16 %v672
    %v747 = vunpack.c.l.b16 %v673
    %v748 = vunpack.c.h.b16 %v673
    %v749 = vunpack.c.l.b16 %v674
    %v750 = vunpack.c.h.b16 %v674
    %v751 = vunpack.c.l.b16 %v675
    %v752 = vunpack.c.h.b16 %v675
    %v753 = vunpack.c.l.b16 %v676
    %v754 = vunpack.c.h.b16 %v676
    %v755 = vunpack.c.l.b16 %v677
    %v756 = vunpack.c.h.b16 %v677
    %v757 = vunpack.c.l.b16 %v678
    %v758 = vunpack.c.h.b16 %v678
    %v759 = vunpack.c.l.b16 %v679
    %v760 = vunpack.c.h.b16 %v679
    %v761 = vunpack.c.l.b16 %v680
    %v762 = vunpack.c.h.b16 %v680
    %v763 = vunpack.c.l.b16 %v681
    %v764 = vunpack.c.h.b16 %v681
    %v765 = vunpack.c.l.b16 %v682
    %v766 = vunpack.c.h.b16 %v682
    %v767 = vunpack.c.l.b16 %v683
    %v768 = vunpack.c.h.b16 %v683
    %v769 = vunpack.c.l.b16 %v684
    %v770 = vunpack.c.h.b16 %v684
    %v771 = vunpack.c.l.b16 %v685
    %v772 = vunpack.c.h.b16 %v685
    %v773 = vunpack.c.l.b16 %v686
    %v774 = vunpack.c.h.b16 %v686
    %v775 = vunpack.c.l.b16 %v687
    %v776 = vunpack.c.h.b16 %v687
    %v777 = vunpack.c.l.b16 %v688
    %v778 = vunpack.c.h.b16 %v688
    %v779 = vunpack.c.l.b16 %v689
    %v780 = vunpack.c.h.b16 %v689
    %v781 = vunpack.c.l.b16 %v690
    %v782 = vunpack.c.h.b16 %v690
    %v783 = vunpack.c.l.b16 %v691
    %v784 = vunpack.c.h.b16 %v691
    %v785 = vunpack.c.l.b16 %v692
    %v786 = vunpack.c.h.b16 %v692
    %v787 = vunpack.c.l.b16 %v693
    %v788 = vunpack.c.h.b16 %v693
    %v789 = vunpack.c.l.b16 %v694
    %v790 = vunpack.c.h.b16 %v694
    %v791 = vpack.c.b16 %v731, %v727
    %v792 = vpack.c.b16 %v732, %v728
    %v793 = vpack.c.b16 %v733, %v729
    %v794 = vpack.c.b16 %v734, %v730
    %v795 = vpack.c.b16 %v739, %v735
    %v796 = vpack.c.b16 %v740, %v736
    %v797 = vpack.c.b16 %v741, %v737
    %v798 = vpack.c.b16 %v742, %v738
    %v799 = vpack.c.b16 %v747, %v743
    %v800 = vpack.c.b16 %v748, %v744
    %v801 = vpack.c.b16 %v749, %v745
    %v802 = vpack.c.b16 %v750, %v746
    %v803 = vpack.c.b16 %v755, %v751
    %v804 = vpack.c.b16 %v756, %v752
    %v805 = vpack.c.b16 %v757, %v753
    %v806 = vpack.c.b16 %v758, %v754
    %v807 = vpack.c.b16 %v763, %v759
    %v808 = vpack.c.b16 %v764, %v760
    %v809 = vpack.c.b16 %v765, %v761
    %v810 = vpack.c.b16 %v766, %v762
    %v811 = vpack.c.b16 %v771, %v767
    %v812 = vpack.c.b16 %v772, %v768
    %v813 = vpack.c.b16 %v773, %v769
    %v814 = vpack.c.b16 %v774, %v770
    %v815 = vpack.c.b16 %v779, %v775
    %v816 = vpack.c.b16 %v780, %v776
    %v817 = vpack.c.b16 %v781, %v777
    %v818 = vpack.c.b16 %v782, %v778
    %v819 = vpack.c.b16 %v787, %v783
    %v820 = vpack.c.b16 %v788, %v784
    %v821 = vpack.c.b16 %v789, %v785
    %v822 = vpack.c.b16 %v790, %v786
    %855 = vmatprep.subr.bf16.mxu0 %v820
    %856 = vmatpush1.bf16.msra.mxu0 %v819
    %857 = vmatprep.subr.bf16.mxu0 %v816
    %858 = vmatpush1.bf16.msra.mxu0 %v815
    %859 = vmatprep.subr.bf16.mxu0 %v812
    %860 = vmatpush1.bf16.msra.mxu0 %v811
    %861 = vmatprep.subr.bf16.mxu0 %v808
    %862 = vmatpush1.bf16.msra.mxu0 %v807
    %863 = vmatprep.subr.bf16.mxu0 %v804
    %864 = vmatpush1.bf16.msra.mxu0 %v803
    %865 = vmatprep.subr.bf16.mxu0 %v800
    %866 = vmatpush1.bf16.msra.mxu0 %v799
    %867 = vmatprep.subr.bf16.mxu0 %v796
    %868 = vmatpush1.bf16.msra.mxu0 %v795
    %869 = vmatprep.subr.bf16.mxu0 %v792
    %870 = vmatpush1.bf16.msra.mxu0 %v791
    %871 = vmatprep.subr.bf16.mxu0 0
    %872 = vmatpush2.bf16.msra.mxu0 0
    %873 = vmatprep.subr.bf16.mxu0 0
    %874 = vmatpush2.bf16.msra.mxu0 0
    %875 = vmatprep.subr.bf16.mxu0 0
    %876 = vmatpush2.bf16.msra.mxu0 0
    %877 = vmatprep.subr.bf16.mxu0 0
    %878 = vmatpush2.bf16.msra.mxu0 0
    %879 = vmatprep.subr.bf16.mxu0 0
    %880 = vmatpush2.bf16.msra.mxu0 0
    %881 = vmatprep.subr.bf16.mxu0 0
    %882 = vmatpush2.bf16.msra.mxu0 0
    %883 = vmatprep.subr.bf16.mxu0 0
    %884 = vmatpush2.bf16.msra.mxu0 0
    %885 = vmatprep.subr.bf16.mxu0 0
    %886 = vmatpush2.bf16.msra.mxu0 0
    %887 = vmatprep.mubr.bf16.mxu0 0
    %888 = vmatmul.mubr.bf16.gmra.mxu0 %v662
    %v889 = vpop.f32.mrf.mxu0
    %v890 = vadd.f32 0.0, %v889
    %v891 = vpop.f32.mrf.mxu0
    %v892 = vadd.f32 0.0, %v891
    %v893 = vpop.f32.mrf.mxu0
    %v894 = vpop.f32.mrf.mxu0
    %895 = vdwg.mxu0
    %896 = vmatprep.subr.bf16.mxu0 %v822
    %897 = vmatpush1.bf16.msra.mxu0 %v821
    %898 = vmatprep.subr.bf16.mxu0 %v818
    %899 = vmatpush1.bf16.msra.mxu0 %v817
    %900 = vmatprep.subr.bf16.mxu0 %v814
    %901 = vmatpush1.bf16.msra.mxu0 %v813
    %902 = vmatprep.subr.bf16.mxu0 %v810
    %903 = vmatpush1.bf16.msra.mxu0 %v809
    %904 = vmatprep.subr.bf16.mxu0 %v806
    %905 = vmatpush1.bf16.msra.mxu0 %v805
    %906 = vmatprep.subr.bf16.mxu0 %v802
    %907 = vmatpush1.bf16.msra.mxu0 %v801
    %908 = vmatprep.subr.bf16.mxu0 %v798
    %909 = vmatpush1.bf16.msra.mxu0 %v797
    %910 = vmatprep.subr.bf16.mxu0 %v794
    %911 = vmatpush1.bf16.msra.mxu0 %v793
    %912 = vmatprep.subr.bf16.mxu0 0
    %913 = vmatpush2.bf16.msra.mxu0 0
    %914 = vmatprep.subr.bf16.mxu0 0
    %915 = vmatpush2.bf16.msra.mxu0 0
    %916 = vmatprep.subr.bf16.mxu0 0
    %917 = vmatpush2.bf16.msra.mxu0 0
    %918 = vmatprep.subr.bf16.mxu0 0
    %919 = vmatpush2.bf16.msra.mxu0 0
    %920 = vmatprep.subr.bf16.mxu0 0
    %921 = vmatpush2.bf16.msra.mxu0 0
    %922 = vmatprep.subr.bf16.mxu0 0
    %923 = vmatpush2.bf16.msra.mxu0 0
    %924 = vmatprep.subr.bf16.mxu0 0
    %925 = vmatpush2.bf16.msra.mxu0 0
    %926 = vmatprep.subr.bf16.mxu0 0
    %927 = vmatpush2.bf16.msra.mxu0 0
    %928 = vmatprep.mubr.bf16.mxu0 0
    %929 = vmatmul.mubr.bf16.gmra.mxu0 %v662
    %v930 = vpop.f32.mrf.mxu0
    %v931 = vadd.f32 0.0, %v930
    %v932 = vpop.f32.mrf.mxu0
    %v933 = vadd.f32 0.0, %v932
    %v934 = vpop.f32.mrf.mxu0
    %v935 = vpop.f32.mrf.mxu0
    %936 = vdwg.mxu0
    %v937 = vld [vmem:[#allocation12] sm:$0xff]
    %v938 = vld [vmem:[#allocation12 + $0x8] sm:$0xff]
    %v939 = vld [vmem:[#allocation12 + $0x10] sm:$0xff]
    %v940 = vld [vmem:[#allocation12 + $0x18] sm:$0xff]
    %v941 = vld [vmem:[#allocation12 + $0x20] sm:$0xff]
    %v942 = vld [vmem:[#allocation12 + $0x28] sm:$0xff]
    %v943 = vld [vmem:[#allocation12 + $0x30] sm:$0xff]
    %v944 = vld [vmem:[#allocation12 + $0x38] sm:$0xff]
    %v945 = vld [vmem:[#allocation12 + $0x40] sm:$0xff]
    %v946 = vld [vmem:[#allocation12 + $0x48] sm:$0xff]
    %v947 = vld [vmem:[#allocation12 + $0x50] sm:$0xff]
    %v948 = vld [vmem:[#allocation12 + $0x58] sm:$0xff]
    %v949 = vld [vmem:[#allocation12 + $0x60] sm:$0xff]
    %v950 = vld [vmem:[#allocation12 + $0x68] sm:$0xff]
    %v951 = vld [vmem:[#allocation12 + $0x70] sm:$0xff]
    %v952 = vld [vmem:[#allocation12 + $0x78] sm:$0xff]
    %v953 = vld [vmem:[#allocation12 + $0x80] sm:$0xff]
    %v954 = vld [vmem:[#allocation12 + $0x88] sm:$0xff]
    %v955 = vld [vmem:[#allocation12 + $0x90] sm:$0xff]
    %v956 = vld [vmem:[#allocation12 + $0x98] sm:$0xff]
    %v957 = vld [vmem:[#allocation12 + $0xa0] sm:$0xff]
    %v958 = vld [vmem:[#allocation12 + $0xa8] sm:$0xff]
    %v959 = vld [vmem:[#allocation12 + $0xb0] sm:$0xff]
    %v960 = vld [vmem:[#allocation12 + $0xb8] sm:$0xff]
    %v961 = vld [vmem:[#allocation12 + $0xc0] sm:$0xff]
    %v962 = vld [vmem:[#allocation12 + $0xc8] sm:$0xff]
    %v963 = vld [vmem:[#allocation12 + $0xd0] sm:$0xff]
    %v964 = vld [vmem:[#allocation12 + $0xd8] sm:$0xff]
    %v965 = vld [vmem:[#allocation12 + $0xe0] sm:$0xff]
    %v966 = vld [vmem:[#allocation12 + $0xe8] sm:$0xff]
    %v967 = vld [vmem:[#allocation12 + $0xf0] sm:$0xff]
    %v968 = vld [vmem:[#allocation12 + $0xf8] sm:$0xff]
    %v1001 = vunpack.c.l.b16 %v937
    %v1002 = vunpack.c.h.b16 %v937
    %v1003 = vunpack.c.l.b16 %v938
    %v1004 = vunpack.c.h.b16 %v938
    %v1005 = vunpack.c.l.b16 %v939
    %v1006 = vunpack.c.h.b16 %v939
    %v1007 = vunpack.c.l.b16 %v940
    %v1008 = vunpack.c.h.b16 %v940
    %v1009 = vunpack.c.l.b16 %v941
    %v1010 = vunpack.c.h.b16 %v941
    %v1011 = vunpack.c.l.b16 %v942
    %v1012 = vunpack.c.h.b16 %v942
    %v1013 = vunpack.c.l.b16 %v943
    %v1014 = vunpack.c.h.b16 %v943
    %v1015 = vunpack.c.l.b16 %v944
    %v1016 = vunpack.c.h.b16 %v944
    %v1017 = vunpack.c.l.b16 %v945
    %v1018 = vunpack.c.h.b16 %v945
    %v1019 = vunpack.c.l.b16 %v946
    %v1020 = vunpack.c.h.b16 %v946
    %v1021 = vunpack.c.l.b16 %v947
    %v1022 = vunpack.c.h.b16 %v947
    %v1023 = vunpack.c.l.b16 %v948
    %v1024 = vunpack.c.h.b16 %v948
    %v1025 = vunpack.c.l.b16 %v949
    %v1026 = vunpack.c.h.b16 %v949
    %v1027 = vunpack.c.l.b16 %v950
    %v1028 = vunpack.c.h.b16 %v950
    %v1029 = vunpack.c.l.b16 %v951
    %v1030 = vunpack.c.h.b16 %v951
    %v1031 = vunpack.c.l.b16 %v952
    %v1032 = vunpack.c.h.b16 %v952
    %v1033 = vunpack.c.l.b16 %v953
    %v1034 = vunpack.c.h.b16 %v953
    %v1035 = vunpack.c.l.b16 %v954
    %v1036 = vunpack.c.h.b16 %v954
    %v1037 = vunpack.c.l.b16 %v955
    %v1038 = vunpack.c.h.b16 %v955
    %v1039 = vunpack.c.l.b16 %v956
    %v1040 = vunpack.c.h.b16 %v956
    %v1041 = vunpack.c.l.b16 %v957
    %v1042 = vunpack.c.h.b16 %v957
    %v1043 = vunpack.c.l.b16 %v958
    %v1044 = vunpack.c.h.b16 %v958
    %v1045 = vunpack.c.l.b16 %v959
    %v1046 = vunpack.c.h.b16 %v959
    %v1047 = vunpack.c.l.b16 %v960
    %v1048 = vunpack.c.h.b16 %v960
    %v1049 = vunpack.c.l.b16 %v961
    %v1050 = vunpack.c.h.b16 %v961
    %v1051 = vunpack.c.l.b16 %v962
    %v1052 = vunpack.c.h.b16 %v962
    %v1053 = vunpack.c.l.b16 %v963
    %v1054 = vunpack.c.h.b16 %v963
    %v1055 = vunpack.c.l.b16 %v964
    %v1056 = vunpack.c.h.b16 %v964
    %v1057 = vunpack.c.l.b16 %v965
    %v1058 = vunpack.c.h.b16 %v965
    %v1059 = vunpack.c.l.b16 %v966
    %v1060 = vunpack.c.h.b16 %v966
    %v1061 = vunpack.c.l.b16 %v967
    %v1062 = vunpack.c.h.b16 %v967
    %v1063 = vunpack.c.l.b16 %v968
    %v1064 = vunpack.c.h.b16 %v968
    %v1065 = vpack.c.b16 %v1005, %v1001
    %v1066 = vpack.c.b16 %v1006, %v1002
    %v1067 = vpack.c.b16 %v1007, %v1003
    %v1068 = vpack.c.b16 %v1008, %v1004
    %v1069 = vpack.c.b16 %v1013, %v1009
    %v1070 = vpack.c.b16 %v1014, %v1010
    %v1071 = vpack.c.b16 %v1015, %v1011
    %v1072 = vpack.c.b16 %v1016, %v1012
    %v1073 = vpack.c.b16 %v1021, %v1017
    %v1074 = vpack.c.b16 %v1022, %v1018
    %v1075 = vpack.c.b16 %v1023, %v1019
    %v1076 = vpack.c.b16 %v1024, %v1020
    %v1077 = vpack.c.b16 %v1029, %v1025
    %v1078 = vpack.c.b16 %v1030, %v1026
    %v1079 = vpack.c.b16 %v1031, %v1027
    %v1080 = vpack.c.b16 %v1032, %v1028
    %v1081 = vpack.c.b16 %v1037, %v1033
    %v1082 = vpack.c.b16 %v1038, %v1034
    %v1083 = vpack.c.b16 %v1039, %v1035
    %v1084 = vpack.c.b16 %v1040, %v1036
    %v1085 = vpack.c.b16 %v1045, %v1041
    %v1086 = vpack.c.b16 %v1046, %v1042
    %v1087 = vpack.c.b16 %v1047, %v1043
    %v1088 = vpack.c.b16 %v1048, %v1044
    %v1089 = vpack.c.b16 %v1053, %v1049
    %v1090 = vpack.c.b16 %v1054, %v1050
    %v1091 = vpack.c.b16 %v1055, %v1051
    %v1092 = vpack.c.b16 %v1056, %v1052
    %v1093 = vpack.c.b16 %v1061, %v1057
    %v1094 = vpack.c.b16 %v1062, %v1058
    %v1095 = vpack.c.b16 %v1063, %v1059
    %v1096 = vpack.c.b16 %v1064, %v1060
    %1129 = vmatprep.subr.bf16.mxu0 %v1094
    %1130 = vmatpush1.bf16.msra.mxu0 %v1093
    %1131 = vmatprep.subr.bf16.mxu0 %v1090
    %1132 = vmatpush1.bf16.msra.mxu0 %v1089
    %1133 = vmatprep.subr.bf16.mxu0 %v1086
    %1134 = vmatpush1.bf16.msra.mxu0 %v1085
    %1135 = vmatprep.subr.bf16.mxu0 %v1082
    %1136 = vmatpush1.bf16.msra.mxu0 %v1081
    %1137 = vmatprep.subr.bf16.mxu0 %v1078
    %1138 = vmatpush1.bf16.msra.mxu0 %v1077
    %1139 = vmatprep.subr.bf16.mxu0 %v1074
    %1140 = vmatpush1.bf16.msra.mxu0 %v1073
    %1141 = vmatprep.subr.bf16.mxu0 %v1070
    %1142 = vmatpush1.bf16.msra.mxu0 %v1069
    %1143 = vmatprep.subr.bf16.mxu0 %v1066
    %1144 = vmatpush1.bf16.msra.mxu0 %v1065
    %1145 = vmatprep.subr.bf16.mxu0 0
    %1146 = vmatpush2.bf16.msra.mxu0 0
    %1147 = vmatprep.subr.bf16.mxu0 0
    %1148 = vmatpush2.bf16.msra.mxu0 0
    %1149 = vmatprep.subr.bf16.mxu0 0
    %1150 = vmatpush2.bf16.msra.mxu0 0
    %1151 = vmatprep.subr.bf16.mxu0 0
    %1152 = vmatpush2.bf16.msra.mxu0 0
    %1153 = vmatprep.subr.bf16.mxu0 0
    %1154 = vmatpush2.bf16.msra.mxu0 0
    %1155 = vmatprep.subr.bf16.mxu0 0
    %1156 = vmatpush2.bf16.msra.mxu0 0
    %1157 = vmatprep.subr.bf16.mxu0 0
    %1158 = vmatpush2.bf16.msra.mxu0 0
    %1159 = vmatprep.subr.bf16.mxu0 0
    %1160 = vmatpush2.bf16.msra.mxu0 0
    %1161 = vmatprep.mubr.bf16.mxu0 0
    %1162 = vmatmul.mubr.bf16.gmra.mxu0 %v662
    %v1163 = vpop.f32.mrf.mxu0
    %v1164 = vadd.f32 0.0, %v1163
    %v1165 = vpop.f32.mrf.mxu0
    %v1166 = vadd.f32 0.0, %v1165
    %v1167 = vpop.f32.mrf.mxu0
    %v1168 = vpop.f32.mrf.mxu0
    %1169 = vdwg.mxu0
    %1170 = vmatprep.subr.bf16.mxu0 %v1096
    %1171 = vmatpush1.bf16.msra.mxu0 %v1095
    %1172 = vmatprep.subr.bf16.mxu0 %v1092
    %1173 = vmatpush1.bf16.msra.mxu0 %v1091
    %1174 = vmatprep.subr.bf16.mxu0 %v1088
    %1175 = vmatpush1.bf16.msra.mxu0 %v1087
    %1176 = vmatprep.subr.bf16.mxu0 %v1084
    %1177 = vmatpush1.bf16.msra.mxu0 %v1083
    %1178 = vmatprep.subr.bf16.mxu0 %v1080
    %1179 = vmatpush1.bf16.msra.mxu0 %v1079
    %1180 = vmatprep.subr.bf16.mxu0 %v1076
    %1181 = vmatpush1.bf16.msra.mxu0 %v1075
    %1182 = vmatprep.subr.bf16.mxu0 %v1072
    %1183 = vmatpush1.bf16.msra.mxu0 %v1071
    %1184 = vmatprep.subr.bf16.mxu0 %v1068
    %1185 = vmatpush1.bf16.msra.mxu0 %v1067
    %1186 = vmatprep.subr.bf16.mxu0 0
    %1187 = vmatpush2.bf16.msra.mxu0 0
    %1188 = vmatprep.subr.bf16.mxu0 0
    %1189 = vmatpush2.bf16.msra.mxu0 0
    %1190 = vmatprep.subr.bf16.mxu0 0
    %1191 = vmatpush2.bf16.msra.mxu0 0
    %1192 = vmatprep.subr.bf16.mxu0 0
    %1193 = vmatpush2.bf16.msra.mxu0 0
    %1194 = vmatprep.subr.bf16.mxu0 0
    %1195 = vmatpush2.bf16.msra.mxu0 0
    %1196 = vmatprep.subr.bf16.mxu0 0
    %1197 = vmatpush2.bf16.msra.mxu0 0
    %1198 = vmatprep.subr.bf16.mxu0 0
    %1199 = vmatpush2.bf16.msra.mxu0 0
    %1200 = vmatprep.subr.bf16.mxu0 0
    %1201 = vmatpush2.bf16.msra.mxu0 0
    %1202 = vmatprep.mubr.bf16.mxu0 0
    %1203 = vmatmul.mubr.bf16.gmra.mxu0 %v662
    %v1204 = vpop.f32.mrf.mxu0
    %v1205 = vadd.f32 0.0, %v1204
    %v1206 = vpop.f32.mrf.mxu0
    %v1207 = vadd.f32 0.0, %v1206
    %v1208 = vpop.f32.mrf.mxu0
    %v1209 = vpop.f32.mrf.mxu0
    %1210 = vdwg.mxu0
    %v1211 = vpack.c.bf16 %v1164, %v890
    %v1212 = vpack.c.bf16 %v1166, %v892
    %v1213 = vpack.c.bf16 %v1205, %v931
    %v1214 = vpack.c.bf16 %v1207, %v933
    %v1215 = vld [vmem:[%s4] sm:$0xf]
    %v1216 = vld [vmem:[#allocation14] sm:$0xf]
    %v1218 = vlaneseq
    %v1219 = vshrl.u32 %v1218, 7
    %v1220 = vsub.s32 0, %v1219
    %v1221 = vrot.slane %v1216, %v1220
    %v1222 = vlaneseq
    %v1223 = vshrl.u32 %v1222, 7
    %v1224 = vsub.s32 1, %v1223
    %v1225 = vrot.slane %v1216, %v1224
    %v1226 = vlaneseq
    %v1227 = vshrl.u32 %v1226, 7
    %v1228 = vsub.s32 2, %v1227
    %v1229 = vrot.slane %v1216, %v1228
    %v1230 = vlaneseq
    %v1231 = vshrl.u32 %v1230, 7
    %v1232 = vsub.s32 3, %v1231
    %v1233 = vrot.slane %v1216, %v1232
    %vm1238 = vcmask 130048
    %v1240 = vsel %vm1238, %v1215, 0
    %1242 = vmatprep.subr.bf16.mxu0 0
    %1243 = vmatpush1.bf16.msra.mxu0 0
    %1244 = vmatprep.subr.bf16.mxu0 0
    %1245 = vmatpush1.bf16.msra.mxu0 0
    %1246 = vmatprep.subr.bf16.mxu0 0
    %1247 = vmatpush1.bf16.msra.mxu0 0
    %1248 = vmatprep.subr.bf16.mxu0 0
    %1249 = vmatpush1.bf16.msra.mxu0 0
    %1250 = vmatprep.subr.bf16.mxu0 0
    %1251 = vmatpush1.bf16.msra.mxu0 0
    %1252 = vmatprep.subr.bf16.mxu0 0
    %1253 = vmatpush1.bf16.msra.mxu0 0
    %1254 = vmatprep.subr.bf16.mxu0 0
    %1255 = vmatpush1.bf16.msra.mxu0 0
    %1256 = vmatprep.subr.bf16.mxu0 %v1212
    %1257 = vmatpush1.bf16.msra.mxu0 %v1211
    %1258 = vmatprep.subr.bf16.mxu0 0
    %1259 = vmatpush2.bf16.msra.mxu0 0
    %1260 = vmatprep.subr.bf16.mxu0 0
    %1261 = vmatpush2.bf16.msra.mxu0 0
    %1262 = vmatprep.subr.bf16.mxu0 0
    %1263 = vmatpush2.bf16.msra.mxu0 0
    %1264 = vmatprep.subr.bf16.mxu0 0
    %1265 = vmatpush2.bf16.msra.mxu0 0
    %1266 = vmatprep.subr.bf16.mxu0 0
    %1267 = vmatpush2.bf16.msra.mxu0 0
    %1268 = vmatprep.subr.bf16.mxu0 0
    %1269 = vmatpush2.bf16.msra.mxu0 0
    %1270 = vmatprep.subr.bf16.mxu0 0
    %1271 = vmatpush2.bf16.msra.mxu0 0
    %1272 = vmatprep.subr.bf16.mxu0 0
    %1273 = vmatpush2.bf16.msra.mxu0 0
    %1274 = vmatprep.mubr.bf16.mxu0 0
    %1275 = vmatmul.mubr.bf16.gmra.mxu0 %v1240
    %v1276 = vpop.f32.mrf.mxu0
    %v1277 = vadd.f32 %v1221, %v1276
    %v1278 = vpop.f32.mrf.mxu0
    %v1279 = vadd.f32 %v1225, %v1278
    %v1280 = vpop.f32.mrf.mxu0
    %v1281 = vpop.f32.mrf.mxu0
    %1282 = vdwg.mxu0
    %1283 = vmatprep.subr.bf16.mxu0 0
    %1284 = vmatpush1.bf16.msra.mxu0 0
    %1285 = vmatprep.subr.bf16.mxu0 0
    %1286 = vmatpush1.bf16.msra.mxu0 0
    %1287 = vmatprep.subr.bf16.mxu0 0
    %1288 = vmatpush1.bf16.msra.mxu0 0
    %1289 = vmatprep.subr.bf16.mxu0 0
    %1290 = vmatpush1.bf16.msra.mxu0 0
    %1291 = vmatprep.subr.bf16.mxu0 0
    %1292 = vmatpush1.bf16.msra.mxu0 0
    %1293 = vmatprep.subr.bf16.mxu0 0
    %1294 = vmatpush1.bf16.msra.mxu0 0
    %1295 = vmatprep.subr.bf16.mxu0 0
    %1296 = vmatpush1.bf16.msra.mxu0 0
    %1297 = vmatprep.subr.bf16.mxu0 %v1214
    %1298 = vmatpush1.bf16.msra.mxu0 %v1213
    %1299 = vmatprep.subr.bf16.mxu0 0
    %1300 = vmatpush2.bf16.msra.mxu0 0
    %1301 = vmatprep.subr.bf16.mxu0 0
    %1302 = vmatpush2.bf16.msra.mxu0 0
    %1303 = vmatprep.subr.bf16.mxu0 0
    %1304 = vmatpush2.bf16.msra.mxu0 0
    %1305 = vmatprep.subr.bf16.mxu0 0
    %1306 = vmatpush2.bf16.msra.mxu0 0
    %1307 = vmatprep.subr.bf16.mxu0 0
    %1308 = vmatpush2.bf16.msra.mxu0 0
    %1309 = vmatprep.subr.bf16.mxu0 0
    %1310 = vmatpush2.bf16.msra.mxu0 0
    %1311 = vmatprep.subr.bf16.mxu0 0
    %1312 = vmatpush2.bf16.msra.mxu0 0
    %1313 = vmatprep.subr.bf16.mxu0 0
    %1314 = vmatpush2.bf16.msra.mxu0 0
    %1315 = vmatprep.mubr.bf16.mxu0 0
    %1316 = vmatmul.mubr.bf16.gmra.mxu0 %v1240
    %v1317 = vpop.f32.mrf.mxu0
    %v1318 = vadd.f32 %v1229, %v1317
    %v1319 = vpop.f32.mrf.mxu0
    %v1320 = vadd.f32 %v1233, %v1319
    %v1321 = vpop.f32.mrf.mxu0
    %v1322 = vpop.f32.mrf.mxu0
    %1323 = vdwg.mxu0
    %v1324 = vmax.f32 %v1277, %v1318
    %v1325 = vmax.f32 %v1279, %v1320
    %v1326 = vpack.c.bf16 %v1324, %v1324
    %v1327 = vpack.c.bf16 %v1325, %v1325
    %v1328 = vld [vmem:[%s13] sm:$0xf]
    %v1329 = vld [vmem:[%s13 + $0x4] sm:$0xf]
    %v1330 = vld [vmem:[%s13 + $0x8] sm:$0xf]
    %v1331 = vld [vmem:[%s13 + $0xc] sm:$0xf]
    %v1332 = vld [vmem:[%s13 + $0x10] sm:$0xf]
    %v1333 = vld [vmem:[%s13 + $0x14] sm:$0xf]
    %v1334 = vld [vmem:[%s13 + $0x18] sm:$0xf]
    %v1335 = vld [vmem:[%s13 + $0x1c] sm:$0xf]
    %v1336 = vld [vmem:[%s13 + $0x20] sm:$0xf]
    %v1337 = vld [vmem:[%s13 + $0x24] sm:$0xf]
    %v1338 = vld [vmem:[%s13 + $0x28] sm:$0xf]
    %v1339 = vld [vmem:[%s13 + $0x2c] sm:$0xf]
    %v1340 = vld [vmem:[%s13 + $0x30] sm:$0xf]
    %v1341 = vld [vmem:[%s13 + $0x34] sm:$0xf]
    %v1342 = vld [vmem:[%s13 + $0x38] sm:$0xf]
    %v1343 = vld [vmem:[%s13 + $0x3c] sm:$0xf]
    %v1344 = vld [vmem:[%s13 + $0x40] sm:$0xf]
    %v1345 = vld [vmem:[%s13 + $0x44] sm:$0xf]
    %v1346 = vld [vmem:[%s13 + $0x48] sm:$0xf]
    %v1347 = vld [vmem:[%s13 + $0x4c] sm:$0xf]
    %v1348 = vld [vmem:[%s13 + $0x50] sm:$0xf]
    %v1349 = vld [vmem:[%s13 + $0x54] sm:$0xf]
    %v1350 = vld [vmem:[%s13 + $0x58] sm:$0xf]
    %v1351 = vld [vmem:[%s13 + $0x5c] sm:$0xf]
    %v1352 = vld [vmem:[%s13 + $0x60] sm:$0xf]
    %v1353 = vld [vmem:[%s13 + $0x64] sm:$0xf]
    %v1354 = vld [vmem:[%s13 + $0x68] sm:$0xf]
    %v1355 = vld [vmem:[%s13 + $0x6c] sm:$0xf]
    %v1356 = vld [vmem:[%s13 + $0x70] sm:$0xf]
    %v1357 = vld [vmem:[%s13 + $0x74] sm:$0xf]
    %v1358 = vld [vmem:[%s13 + $0x78] sm:$0xf]
    %v1359 = vld [vmem:[%s13 + $0x7c] sm:$0xf]
    %v1360 = vld [vmem:[#allocation15] sm:$0x1]
    %v1362 = vlaneseq
    %v1363 = vshrl.u32 %v1362, 7
    %v1364 = vsub.s32 0, %v1363
    %v1365 = vrot.slane %v1360, %v1364
    %v1399 = vunpack.c.l.b16 %v1328
    %v1400 = vunpack.c.l.b16 %v1329
    %v1401 = vunpack.c.l.b16 %v1330
    %v1402 = vunpack.c.l.b16 %v1331
    %v1403 = vunpack.c.l.b16 %v1332
    %v1404 = vunpack.c.l.b16 %v1333
    %v1405 = vunpack.c.l.b16 %v1334
    %v1406 = vunpack.c.l.b16 %v1335
    %v1407 = vunpack.c.l.b16 %v1336
    %v1408 = vunpack.c.l.b16 %v1337
    %v1409 = vunpack.c.l.b16 %v1338
    %v1410 = vunpack.c.l.b16 %v1339
    %v1411 = vunpack.c.l.b16 %v1340
    %v1412 = vunpack.c.l.b16 %v1341
    %v1413 = vunpack.c.l.b16 %v1342
    %v1414 = vunpack.c.l.b16 %v1343
    %v1415 = vunpack.c.l.b16 %v1344
    %v1416 = vunpack.c.l.b16 %v1345
    %v1417 = vunpack.c.l.b16 %v1346
    %v1418 = vunpack.c.l.b16 %v1347
    %v1419 = vunpack.c.l.b16 %v1348
    %v1420 = vunpack.c.l.b16 %v1349
    %v1421 = vunpack.c.l.b16 %v1350
    %v1422 = vunpack.c.l.b16 %v1351
    %v1423 = vunpack.c.l.b16 %v1352
    %v1424 = vunpack.c.l.b16 %v1353
    %v1425 = vunpack.c.l.b16 %v1354
    %v1426 = vunpack.c.l.b16 %v1355
    %v1427 = vunpack.c.l.b16 %v1356
    %v1428 = vunpack.c.l.b16 %v1357
    %v1429 = vunpack.c.l.b16 %v1358
    %v1430 = vunpack.c.l.b16 %v1359
    %v1431 = vpack.c.b16 %v1400, %v1399
    %v1432 = vpack.c.b16 %v1402, %v1401
    %v1433 = vpack.c.b16 %v1404, %v1403
    %v1434 = vpack.c.b16 %v1406, %v1405
    %v1435 = vpack.c.b16 %v1408, %v1407
    %v1436 = vpack.c.b16 %v1410, %v1409
    %v1437 = vpack.c.b16 %v1412, %v1411
    %v1438 = vpack.c.b16 %v1414, %v1413
    %v1439 = vpack.c.b16 %v1416, %v1415
    %v1440 = vpack.c.b16 %v1418, %v1417
    %v1441 = vpack.c.b16 %v1420, %v1419
    %v1442 = vpack.c.b16 %v1422, %v1421
    %v1443 = vpack.c.b16 %v1424, %v1423
    %v1444 = vpack.c.b16 %v1426, %v1425
    %v1445 = vpack.c.b16 %v1428, %v1427
    %v1446 = vpack.c.b16 %v1430, %v1429
    %1463 = vmatprep.subr.bf16.mxu0 0
    %1464 = vmatpush1.bf16.msra.mxu0 %v1438
    %1465 = vmatprep.subr.bf16.mxu0 0
    %1466 = vmatpush1.bf16.msra.mxu0 %v1437
    %1467 = vmatprep.subr.bf16.mxu0 0
    %1468 = vmatpush1.bf16.msra.mxu0 %v1436
    %1469 = vmatprep.subr.bf16.mxu0 0
    %1470 = vmatpush1.bf16.msra.mxu0 %v1435
    %1471 = vmatprep.subr.bf16.mxu0 0
    %1472 = vmatpush1.bf16.msra.mxu0 %v1434
    %1473 = vmatprep.subr.bf16.mxu0 0
    %1474 = vmatpush1.bf16.msra.mxu0 %v1433
    %1475 = vmatprep.subr.bf16.mxu0 0
    %1476 = vmatpush1.bf16.msra.mxu0 %v1432
    %1477 = vmatprep.subr.bf16.mxu0 0
    %1478 = vmatpush1.bf16.msra.mxu0 %v1431
    %1479 = vmatprep.subr.bf16.mxu0 0
    %1480 = vmatpush2.bf16.msra.mxu0 %v1446
    %1481 = vmatprep.subr.bf16.mxu0 0
    %1482 = vmatpush2.bf16.msra.mxu0 %v1445
    %1483 = vmatprep.subr.bf16.mxu0 0
    %1484 = vmatpush2.bf16.msra.mxu0 %v1444
    %1485 = vmatprep.subr.bf16.mxu0 0
    %1486 = vmatpush2.bf16.msra.mxu0 %v1443
    %1487 = vmatprep.subr.bf16.mxu0 0
    %1488 = vmatpush2.bf16.msra.mxu0 %v1442
    %1489 = vmatprep.subr.bf16.mxu0 0
    %1490 = vmatpush2.bf16.msra.mxu0 %v1441
    %1491 = vmatprep.subr.bf16.mxu0 0
    %1492 = vmatpush2.bf16.msra.mxu0 %v1440
    %1493 = vmatprep.subr.bf16.mxu0 0
    %1494 = vmatpush2.bf16.msra.mxu0 %v1439
    %1495 = vmatprep.mubr.bf16.mxu0 %v1327
    %1496 = vmatmul.mubr.bf16.gmra.mxu0 %v1326
    %v1497 = vpop.f32.mrf.mxu0
    %v1498 = vadd.f32 %v1365, %v1497
    %v1499 = vpop.f32.mrf.mxu0
    %v1500 = vpop.f32.mrf.mxu0
    %v1501 = vpop.f32.mrf.mxu0
    %1502 = vdwg.mxu0
    %v1503 = vmax.f32 %v1498, 0.0
    %v1504 = vld [vmem:[%s15] sm:$0x1]
    %v1506 = vlaneseq
    %v1507 = vshrl.u32 %v1506, 7
    %v1508 = vsub.s32 0, %v1507
    %v1509 = vrot.slane %v1504, %v1508
    %v1511 = vmul.f32 %v1503, %v1509
    %1512 = vadd.xlane.f32.xlu0 %v1511
    %v1513 = vpop.xlane.xlu0 %1512
    %v1514 = vld [vmem:[#allocation2] sm:$0x1]
    %v1516 = vlaneseq
    %v1517 = vshrl.u32 %v1516, 7
    %v1518 = vsub.s32 0, %v1517
    %v1519 = vrot.slane %v1514, %v1518
    %v1521 = vadd.f32 %v1513, %v1519
    %v1522 = vxor.u32 %v1521, 2147483648
    %v1523 = vmul.f32 %v1522, 1.442695
    %v1524 = vpow.pop %v1523
    %v1525 = vadd.f32 %v1524, 1.0
    %v1526 = vrcp.pop %v1525
    %v1527 = vmul.f32 1.0, %v1526
    %vm1528 = vcmask 7168
    %1529 = vst.msk [vmem:[%s18] sm:$0xff] %vm1528, %v1527
    // Predicated region
    $region102: #{graph_encoder_forward.1} parent=1 // pred_check
      _
    $region103: #{graph_encoder_forward.1} parent=1 // pred_check_branch
      %1531 = sbr.rel (0) target = $region105
    $region104: #{graph_encoder_forward.1} parent=1 // pred_region
      %s1533 = ssub.s32 128, 128
      %1534 = vsyncadd [#allocation5], %s1533
      %s1536 = sshll.u32 [#allocation17], 4
      %s1537 = int_to_ptr.vmem [resolvable:$true] %s1536
      %1539 = dma.vmem_to_hbm [thread:$0]  %s1537, 128, %s17, [#allocation5]
    $region105: #{graph_encoder_forward.1} parent=1 // pred_fallthru
      _
    // Predicated region
    $region106: #{graph_encoder_forward.1} parent=1 // pred_check
      _
    $region107: #{graph_encoder_forward.1} parent=1 // pred_check_branch
      %1541 = sbr.rel (0) target = $region109
    $region108: #{graph_encoder_forward.1} parent=1 // pred_region
      _
    $region109: #{graph_encoder_forward.1} parent=1 // pred_fallthru
      _
    // Predicated region
    $region110: #{graph_encoder_forward.1} parent=1 // pred_check
      _
    $region111: #{graph_encoder_forward.1} parent=1 // pred_check_branch
      %1543 = sbr.rel (0) target = $region113
    $region112: #{graph_encoder_forward.1} parent=1 // pred_region
      %1544 = dma.done [#allocation5], 128
    $region113: #{graph_encoder_forward.1} parent=1 // pred_fallthru
      _
    // Predicated region
    $region114: #{graph_encoder_forward.1} parent=1 // pred_check
      _
    $region115: #{graph_encoder_forward.1} parent=1 // pred_check_branch
      %1546 = sbr.rel (0) target = $region117
    $region116: #{graph_encoder_forward.1} parent=1 // pred_region
      _
    $region117: #{graph_encoder_forward.1} parent=1 // pred_fallthru
      _
    %1547 = vsyncpa [#allocation4], 1
    %1548 = vsyncpa [#allocation7], 1
    %1549 = vsyncpa [#allocation10], 1
    %1550 = vsyncpa [#allocation13], 1
    %1551 = vsyncpa [#allocation16], 1
    %1552 = vsyncpa [#allocation5], 1

</llo_original>
